<compile_context>
chip_gen: v5e
topology: v5e:2x2
jax: 0.10.0
libtpu: 0.0.40
codegen_flags: <defaults>
</compile_context>

<pallas_src>
import numpy as np
import jax
import jax.numpy as jnp
from jax import lax
from jax.experimental import pallas as pl
from jax.experimental.pallas import tpu as pltpu


def get_frequency_modes(seq_len, modes=64, mode_select_method='random', seed=0):
    """Same as the PyTorch helper, with a fixed numpy seed for determinism."""
    modes = min(modes, seq_len // 2)
    if mode_select_method == 'random':
        rng = np.random.RandomState(seed)
        index = list(range(0, seq_len // 2))
        rng.shuffle(index)
        index = index[:modes]
    else:
        index = list(range(0, modes))
    index.sort()
    return index


def _fourier_block_kernel(x_ref, ft_ref, w_ref, ib_ref, o_ref, xf_sc):
    """One grid step = (batch tile i, head group g).  The whole head group is
    processed inside this step, so there is no cross-step carry and both grid
    axes are safe to mark 'parallel'.

    x_ref : (Bb, L, Hg*E)   bf16  q tile in its native (B, L, H*E) layout
    ft_ref: (2M, L)         bf16  forward DFT basis for selected modes [cos ; -sin]
    w_ref : (Hg*M, 2E, 2O)  bf16  per-(head,mode) complex weights as 2x2 real blocks
    ib_ref: (2M, L)         bf16  inverse-rfft basis for output bins 0..M-1
    o_ref : (Bb, Hg, O, L)        output tile
    xf_sc : (Bb, 2M, Hg*E)  bf16  VMEM scratch: selected-mode spectra, lane-dense
    """
    Bb, M2, HgE = xf_sc.shape
    M = M2 // 2
    Hg, O, L = o_ref.shape[1], o_ref.shape[2], o_ref.shape[3]
    E = HgE // Hg

    ft = ft_ref[...]                                                  # (2M, L) bf16
    ib = ib_ref[...]                                                  # (2M, L) bf16

    # ---- stage 1: selected-mode rfft of the whole tile, one matmul per b ----
    # One lane-dense (2M, Hg*E) store per batch element; fori_loop bounds the
    # live ranges instead of an unrolled value-carrying Python loop.
    def s1_body(b, carry):
        xb = x_ref[b]                                                 # (L, Hg*E) bf16
        xf = jnp.dot(ft, xb, preferred_element_type=jnp.float32)     # (2M, Hg*E) f32
        xf_sc[b] = xf.astype(xf_sc.dtype)
        return carry

    lax.fori_loop(0, Bb, s1_body, 0, unroll=True)

    # Hoisted relayout (once per grid step, not per head): batch -> sublane dim.
    xf_t = jnp.swapaxes(xf_sc[...], 0, 1)                             # (2M, Bb, Hg*E)
    xre_all = xf_t[:M]                                                # (M, Bb, Hg*E)
    xim_all = xf_t[M:]                                                # (M, Bb, Hg*E)

    for h in range(Hg):                                               # static, Hg <= 8
        lo = h * E
        # ---- stage 2: complex mode mix, mode-batched MXU matmul ----
        lhs = jnp.concatenate([xre_all[:, :, lo:lo + E],
                               xim_all[:, :, lo:lo + E]], axis=-1)    # (M, Bb, 2E)
        w_h = w_ref[h * M:(h + 1) * M]                                # (M, 2E, 2O)
        oc = jnp.einsum('mbe,meo->mbo', lhs, w_h,
                        preferred_element_type=jnp.float32)           # (M, Bb, 2O) f32

        # ---- stage 3: inverse rfft over output bins 0..M-1, one matmul ----
        ocb = oc.astype(jnp.bfloat16)
        occ = jnp.concatenate([ocb[:, :, :O], ocb[:, :, O:]], axis=0)  # (2M, Bb, O)
        occ = occ.reshape(M2, Bb * O)                                  # (2M, Bb*O)
        # Transposed-lhs contraction: no materialized (Bb*O, 2M) transpose.
        y = lax.dot_general(occ, ib, (((0,), (0,)), ((), ())),
                            preferred_element_type=jnp.float32)       # (Bb*O, L)
        o_ref[:, h, :, :] = y.reshape(Bb, O, L).astype(o_ref.dtype)


def fourier_block_forward(q, k, v, mask, weights_re, weights_im, index, *,
                          b_block=None, h_block=None, out_dtype=jnp.float32,
                          vmem_limit_bytes=None):
    """JAX/Pallas equivalent of FourierBlock.forward.  Returns (out, None)."""
    del k, v, mask                      # unused by the PyTorch module as well
    B, L, H, E = q.shape
    Hw, Ew, O, M = weights_re.shape
    assert Hw == H and Ew == E and weights_im.shape == weights_re.shape
    assert len(index) == M and 1 <= M <= L // 2

    if b_block is None:
        # Largest divisor of B that is <= 16: stage-2 MXU rows == b_block and
        # stage-3 rows == b_block*O, so bigger tiles directly raise MXU fill.
        # On v7x prefer a value with B // b_block >= 2 so both TensorCores work.
        b_block = max(d for d in range(1, min(B, 16) + 1) if B % d == 0)
    assert B % b_block == 0

    if h_block is None:
        h_block = H                     # all heads per step (v5e/v6e); lower on v7x
    assert H % h_block == 0
    assert h_block == H or (h_block * E) % 128 == 0, (
        "head-group width must be the full H*E dim or a multiple of 128 lanes")

    # ---- host-side constants (float64 numpy, cast to bf16 for the MXU) ----
    idx = np.asarray(index, dtype=np.float64)
    t = np.arange(L, dtype=np.float64)
    ang_f = 2.0 * np.pi * np.outer(idx, t) / L                       # (M, L)
    ft = np.concatenate([np.cos(ang_f), -np.sin(ang_f)], axis=0)     # (2M, L)

    kk = np.arange(M, dtype=np.float64)
    coef = np.where(kk == 0, 1.0, 2.0)[:, None]                      # bin-0 imag dropped
    ang_i = 2.0 * np.pi * np.outer(kk, t) / L                        # (M, L)
    ib = np.concatenate([coef * np.cos(ang_i) / L,
                         -coef * np.sin(ang_i) / L], axis=0)         # (2M, L)

    # Complex weights as per-(head,mode) 2x2 real block matrices: (H*M, 2E, 2O).
    wr = jnp.transpose(weights_re, (0, 3, 1, 2))                     # (H, M, E, O)
    wi = jnp.transpose(weights_im, (0, 3, 1, 2))
    w2 = jnp.concatenate(
        [jnp.concatenate([wr, wi], axis=-1),                         # [ Wre  Wim ]
         jnp.concatenate([-wi, wr], axis=-1)],                       # [-Wim  Wre ]
        axis=-2).reshape(H * M, 2 * E, 2 * O).astype(jnp.bfloat16)

    # x in bf16: halves the dominant HBM read / biggest VMEM buffer.  The PyTorch
    # permute is absorbed into the stage-1 matmul (no HBM transpose pass).
    x = q.astype(jnp.bfloat16).reshape(B, L, H * E)

    grid = (B // b_block, H // h_block)
    M2 = 2 * M

    if vmem_limit_bytes is None:
        out_bytes = jnp.dtype(out_dtype).itemsize
        bufs = (b_block * L * h_block * E * 2                        # x tile (bf16)
                + b_block * h_block * O * L * out_bytes              # out tile
                + 2 * (M2 * L * 2)                                   # ft + ib
                + h_block * M * 2 * E * 2 * O * 2)                   # weights
        scratch_bytes = b_block * M2 * h_block * E * 2
        need = 2 * bufs + scratch_bytes                              # double-buffered
        try:
            phys = int(pltpu.get_tpu_info().vmem_capacity_bytes)
        except Exception:
            phys = 64 << 20                                          # conservative (v7x)
        vmem_limit_bytes = int(min(max(2 * need + (16 << 20), 32 << 20),
                                   100 << 20, phys - (8 << 20)))

    out = pl.pallas_call(
        _fourier_block_kernel,
        out_shape=jax.ShapeDtypeStruct((B, H, O, L), out_dtype),
        grid_spec=pltpu.PrefetchScalarGridSpec(
            num_scalar_prefetch=0,
            grid=grid,
            in_specs=[
                pl.BlockSpec((b_block, L, h_block * E), lambda i, g: (i, 0, g)),
                pl.BlockSpec((M2, L), lambda i, g: (0, 0)),           # forward basis
                pl.BlockSpec((h_block * M, 2 * E, 2 * O),
                             lambda i, g: (g, 0, 0)),                 # head-group weights
                pl.BlockSpec((M2, L), lambda i, g: (0, 0)),           # inverse basis
            ],
            out_specs=pl.BlockSpec((b_block, h_block, O, L),
                                   lambda i, g: (i, g, 0, 0)),
            scratch_shapes=[pltpu.VMEM((b_block, M2, h_block * E), jnp.bfloat16)],
        ),
        compiler_params=pltpu.CompilerParams(
            dimension_semantics=("parallel", "parallel"),
            vmem_limit_bytes=vmem_limit_bytes),
    )(x, jnp.asarray(ft, dtype=jnp.bfloat16), w2,
      jnp.asarray(ib, dtype=jnp.bfloat16))
    return out, None


def fourier_block_reference(q, weights_re, weights_im, index):
    """Pure-JAX reference mirroring the PyTorch forward (uses real FFT ops)."""
    B, L, H, E = q.shape
    x = jnp.transpose(q, (0, 2, 3, 1))
    x_ft = jnp.fft.rfft(x, axis=-1)
    w = (weights_re + 1j * weights_im).astype(jnp.complex64)
    out_ft = jnp.zeros((B, H, E, L // 2 + 1), dtype=jnp.complex64)
    for wi_, i in enumerate(index):
        out_ft = out_ft.at[:, :, :, wi_].set(
            jnp.einsum('bhi,hio->bho', x_ft[:, :, :, i], w[:, :, :, wi_]))
    return jnp.fft.irfft(out_ft, n=L, axis=-1)


if __name__ == "__main__":
    # Small shapes consistent with the module: H is fixed at 8 by the parameter
    # shape, E = in_channels // 8, in_channels == out_channels.
    B, L, H = 2, 16, 8
    in_channels = out_channels = 32
    E = in_channels // 8
    O = out_channels // 8
    modes = 4
    index = get_frequency_modes(L, modes=modes, mode_select_method='random', seed=0)

    scale = 1.0 / (in_channels * out_channels)
    key = jax.random.PRNGKey(0)
    kq, kk_, kv, kwr, kwi = jax.random.split(key, 5)
    q = jax.random.normal(kq, (B, L, H, E), dtype=jnp.float32)
    k = jax.random.normal(kk_, (B, L, H, E), dtype=jnp.float32)
    v = jax.random.normal(kv, (B, L, H, E), dtype=jnp.float32)
    mask = None
    weights_re = (scale * jax.random.uniform(kwr, (8, E, O, len(index)))).astype(jnp.float32)
    weights_im = (scale * jax.random.uniform(kwi, (8, E, O, len(index)))).astype(jnp.float32)

    out, attn = fourier_block_forward(q, k, v, mask, weights_re, weights_im, index)
    out = jax.block_until_ready(out)
    assert out.shape == (B, H, O, L) and attn is None

    ref = fourier_block_reference(q, weights_re, weights_im, index)
    np.testing.assert_allclose(np.asarray(out), np.asarray(ref), rtol=3e-2, atol=1e-3)

    print("KERNEL_OK")
</pallas_src>

<mosaic_0001>
module attributes {stable_mosaic.version = 11 : i64} {
  func.func @_fourier_block_kernel(%arg0: i32, %arg1: i32, %arg2: memref<2x16x32xbf16, #tpu.memory_space<vmem>>, %arg3: memref<8x16xbf16, #tpu.memory_space<vmem>>, %arg4: memref<32x8x8xbf16, #tpu.memory_space<vmem>>, %arg5: memref<8x16xbf16, #tpu.memory_space<vmem>>, %arg6: memref<2x8x4x16xf32, #tpu.memory_space<vmem>>, %arg7: memref<2x8x32xbf16, #tpu.memory_space<vmem>>) attributes {dimension_semantics = [#tpu.dimension_semantics<parallel>, #tpu.dimension_semantics<parallel>], iteration_bounds = array<i64: 1, 1>, scalar_prefetch = 0 : i64, scratch_operands = 1 : i64, tpu.core_type = #tpu.core_type<tc>, window_params = [{transform_indices = @transform_0, window_bounds = array<i64: 2, 16, 32>}, {pipeline_mode = #tpu.pipeline_mode<synchronous>, transform_indices = @transform_1, window_bounds = array<i64: 8, 16>}, {transform_indices = @transform_2, window_bounds = array<i64: 32, 8, 8>}, {pipeline_mode = #tpu.pipeline_mode<synchronous>, transform_indices = @transform_3, window_bounds = array<i64: 8, 16>}, {transform_indices = @transform_4, window_bounds = array<i64: 2, 8, 4, 16>}]} {
    %c0 = arith.constant 0 : index
    %c0_0 = arith.constant 0 : index
    %0 = vector.load %arg3[%c0, %c0_0] : memref<8x16xbf16, #tpu.memory_space<vmem>>, vector<8x16xbf16>
    %c0_1 = arith.constant 0 : index
    %c0_2 = arith.constant 0 : index
    %1 = vector.load %arg5[%c0_1, %c0_2] : memref<8x16xbf16, #tpu.memory_space<vmem>>, vector<8x16xbf16>
    %c0_i32 = arith.constant 0 : i32
    %2 = arith.index_cast %c0_i32 : i32 to index
    %c0_3 = arith.constant 0 : index
    %c0_4 = arith.constant 0 : index
    %3 = vector.load %arg2[%2, %c0_3, %c0_4] : memref<2x16x32xbf16, #tpu.memory_space<vmem>>, vector<1x16x32xbf16>
    %4 = vector.shape_cast %3 : vector<1x16x32xbf16> to vector<16x32xbf16>
    %cst = arith.constant dense<0.000000e+00> : vector<8x32xf32>
    %5 = tpu.matmul %0, %4, %cst {dimension_numbers = #tpu.dot_dimension_numbers<[1], [0], [0], [1], [0, 0, 1, 1], [], []>} : vector<8x16xbf16>, vector<16x32xbf16>, vector<8x32xf32> -> vector<8x32xf32>
    %6 = arith.truncf %5 : vector<8x32xf32> to vector<8x32xbf16>
    %7 = arith.index_cast %c0_i32 : i32 to index
    %c0_5 = arith.constant 0 : index
    %c0_6 = arith.constant 0 : index
    %8 = vector.load %arg7[%7, %c0_5, %c0_6] : memref<2x8x32xbf16, #tpu.memory_space<vmem>>, vector<1x8x32xbf16>
    %9 = vector.shape_cast %8 : vector<1x8x32xbf16> to vector<8x32xbf16>
    %10 = vector.shape_cast %6 : vector<8x32xbf16> to vector<1x8x32xbf16>
    tpu.vector_store %arg7[%7, %c0_5, %c0_6], %10 {strides = array<i32>} : memref<2x8x32xbf16, #tpu.memory_space<vmem>>, vector<1x8x32xbf16>,
    %c1_i32 = arith.constant 1 : i32
    %11 = arith.index_cast %c1_i32 : i32 to index
    %c0_7 = arith.constant 0 : index
    %c0_8 = arith.constant 0 : index
    %12 = vector.load %arg2[%11, %c0_7, %c0_8] : memref<2x16x32xbf16, #tpu.memory_space<vmem>>, vector<1x16x32xbf16>
    %13 = vector.shape_cast %12 : vector<1x16x32xbf16> to vector<16x32xbf16>
    %cst_9 = arith.constant dense<0.000000e+00> : vector<8x32xf32>
    %14 = tpu.matmul %0, %13, %cst_9 {dimension_numbers = #tpu.dot_dimension_numbers<[1], [0], [0], [1], [0, 0, 1, 1], [], []>} : vector<8x16xbf16>, vector<16x32xbf16>, vector<8x32xf32> -> vector<8x32xf32>
    %15 = arith.truncf %14 : vector<8x32xf32> to vector<8x32xbf16>
    %16 = arith.index_cast %c1_i32 : i32 to index
    %c0_10 = arith.constant 0 : index
    %c0_11 = arith.constant 0 : index
    %17 = vector.load %arg7[%16, %c0_10, %c0_11] : memref<2x8x32xbf16, #tpu.memory_space<vmem>>, vector<1x8x32xbf16>
    %18 = vector.shape_cast %17 : vector<1x8x32xbf16> to vector<8x32xbf16>
    %19 = vector.shape_cast %15 : vector<8x32xbf16> to vector<1x8x32xbf16>
    tpu.vector_store %arg7[%16, %c0_10, %c0_11], %19 {strides = array<i32>} : memref<2x8x32xbf16, #tpu.memory_space<vmem>>, vector<1x8x32xbf16>,
    %c2_i32 = arith.constant 2 : i32
    %c0_12 = arith.constant 0 : index
    %c0_13 = arith.constant 0 : index
    %c0_14 = arith.constant 0 : index
    %20 = vector.load %arg7[%c0_12, %c0_13, %c0_14] : memref<2x8x32xbf16, #tpu.memory_space<vmem>>, vector<2x8x32xbf16>
    %21 = tpu.transpose %20, [1, 0, 2] : vector<2x8x32xbf16> -> vector<8x2x32xbf16>
    %22 = vector.extract_strided_slice %21 {offsets = [0, 0, 0], sizes = [4, 2, 32], strides = [1, 1, 1]} : vector<8x2x32xbf16> to vector<4x2x32xbf16>
    %23 = vector.extract_strided_slice %21 {offsets = [4, 0, 0], sizes = [4, 2, 32], strides = [1, 1, 1]} : vector<8x2x32xbf16> to vector<4x2x32xbf16>
    %24 = vector.extract_strided_slice %22 {offsets = [0, 0, 0], sizes = [4, 2, 4], strides = [1, 1, 1]} : vector<4x2x32xbf16> to vector<4x2x4xbf16>
    %25 = vector.extract_strided_slice %23 {offsets = [0, 0, 0], sizes = [4, 2, 4], strides = [1, 1, 1]} : vector<4x2x32xbf16> to vector<4x2x4xbf16>
    %26 = tpu.concatenate %24, %25 in 2 : vector<4x2x4xbf16>, vector<4x2x4xbf16> -> vector<4x2x8xbf16>
    %c0_15 = arith.constant 0 : index
    %c0_16 = arith.constant 0 : index
    %c0_17 = arith.constant 0 : index
    %27 = vector.load %arg4[%c0_15, %c0_16, %c0_17] : memref<32x8x8xbf16, #tpu.memory_space<vmem>>, vector<4x8x8xbf16>
    "tpu.trace_start"() <{level = 10 : i32, message = "mbe,meo->mbo"}> : () -> ()
    %cst_18 = arith.constant dense<0.000000e+00> : vector<4x2x8xf32>
    %28 = tpu.matmul %26, %27, %cst_18 {dimension_numbers = #tpu.dot_dimension_numbers<[2], [1], [1], [2], [0, 0, 0, 1, 1, 2], [0], [0]>} : vector<4x2x8xbf16>, vector<4x8x8xbf16>, vector<4x2x8xf32> -> vector<4x2x8xf32>
    "tpu.trace_stop"() : () -> ()
    %29 = arith.truncf %28 : vector<4x2x8xf32> to vector<4x2x8xbf16>
    %30 = vector.extract_strided_slice %29 {offsets = [0, 0, 0], sizes = [4, 2, 4], strides = [1, 1, 1]} : vector<4x2x8xbf16> to vector<4x2x4xbf16>
    %31 = vector.extract_strided_slice %29 {offsets = [0, 0, 4], sizes = [4, 2, 4], strides = [1, 1, 1]} : vector<4x2x8xbf16> to vector<4x2x4xbf16>
    %32 = tpu.concatenate %30, %31 in 0 : vector<4x2x4xbf16>, vector<4x2x4xbf16> -> vector<8x2x4xbf16>
    %33 = vector.shape_cast %32 : vector<8x2x4xbf16> to vector<8x8xbf16>
    %cst_19 = arith.constant dense<0.000000e+00> : vector<8x16xf32>
    %34 = tpu.matmul %33, %1, %cst_19 {dimension_numbers = #tpu.dot_dimension_numbers<[0], [0], [1], [1], [0, 1, 1, 1], [], []>} : vector<8x8xbf16>, vector<8x16xbf16>, vector<8x16xf32> -> vector<8x16xf32>
    %35 = vector.shape_cast %34 : vector<8x16xf32> to vector<2x4x16xf32>
    %c0_20 = arith.constant 0 : index
    %c0_21 = arith.constant 0 : index
    %c0_22 = arith.constant 0 : index
    %c0_23 = arith.constant 0 : index
    %36 = vector.load %arg6[%c0_20, %c0_21, %c0_22, %c0_23] : memref<2x8x4x16xf32, #tpu.memory_space<vmem>>, vector<2x1x4x16xf32>
    %37 = vector.shape_cast %36 : vector<2x1x4x16xf32> to vector<2x4x16xf32>
    %38 = vector.shape_cast %35 : vector<2x4x16xf32> to vector<2x1x4x16xf32>
    tpu.vector_store %arg6[%c0_20, %c0_21, %c0_22, %c0_23], %38 {strides = array<i32>} : memref<2x8x4x16xf32, #tpu.memory_space<vmem>>, vector<2x1x4x16xf32>,
    %39 = vector.extract_strided_slice %22 {offsets = [0, 0, 4], sizes = [4, 2, 4], strides = [1, 1, 1]} : vector<4x2x32xbf16> to vector<4x2x4xbf16>
    %40 = vector.extract_strided_slice %23 {offsets = [0, 0, 4], sizes = [4, 2, 4], strides = [1, 1, 1]} : vector<4x2x32xbf16> to vector<4x2x4xbf16>
    %41 = tpu.concatenate %39, %40 in 2 : vector<4x2x4xbf16>, vector<4x2x4xbf16> -> vector<4x2x8xbf16>
    %c4 = arith.constant 4 : index
    %c0_24 = arith.constant 0 : index
    %c0_25 = arith.constant 0 : index
    %42 = vector.load %arg4[%c4, %c0_24, %c0_25] : memref<32x8x8xbf16, #tpu.memory_space<vmem>>, vector<4x8x8xbf16>
    "tpu.trace_start"() <{level = 10 : i32, message = "mbe,meo->mbo"}> : () -> ()
    %cst_26 = arith.constant dense<0.000000e+00> : vector<4x2x8xf32>
    %43 = tpu.matmul %41, %42, %cst_26 {dimension_numbers = #tpu.dot_dimension_numbers<[2], [1], [1], [2], [0, 0, 0, 1, 1, 2], [0], [0]>} : vector<4x2x8xbf16>, vector<4x8x8xbf16>, vector<4x2x8xf32> -> vector<4x2x8xf32>
    "tpu.trace_stop"() : () -> ()
    %44 = arith.truncf %43 : vector<4x2x8xf32> to vector<4x2x8xbf16>
    %45 = vector.extract_strided_slice %44 {offsets = [0, 0, 0], sizes = [4, 2, 4], strides = [1, 1, 1]} : vector<4x2x8xbf16> to vector<4x2x4xbf16>
    %46 = vector.extract_strided_slice %44 {offsets = [0, 0, 4], sizes = [4, 2, 4], strides = [1, 1, 1]} : vector<4x2x8xbf16> to vector<4x2x4xbf16>
    %47 = tpu.concatenate %45, %46 in 0 : vector<4x2x4xbf16>, vector<4x2x4xbf16> -> vector<8x2x4xbf16>
    %48 = vector.shape_cast %47 : vector<8x2x4xbf16> to vector<8x8xbf16>
    %cst_27 = arith.constant dense<0.000000e+00> : vector<8x16xf32>
    %49 = tpu.matmul %48, %1, %cst_27 {dimension_numbers = #tpu.dot_dimension_numbers<[0], [0], [1], [1], [0, 1, 1, 1], [], []>} : vector<8x8xbf16>, vector<8x16xbf16>, vector<8x16xf32> -> vector<8x16xf32>
    %50 = vector.shape_cast %49 : vector<8x16xf32> to vector<2x4x16xf32>
    %c0_28 = arith.constant 0 : index
    %c1 = arith.constant 1 : index
    %c0_29 = arith.constant 0 : index
    %c0_30 = arith.constant 0 : index
    %51 = vector.load %arg6[%c0_28, %c1, %c0_29, %c0_30] : memref<2x8x4x16xf32, #tpu.memory_space<vmem>>, vector<2x1x4x16xf32>
    %52 = vector.shape_cast %51 : vector<2x1x4x16xf32> to vector<2x4x16xf32>
    %53 = vector.shape_cast %50 : vector<2x4x16xf32> to vector<2x1x4x16xf32>
    tpu.vector_store %arg6[%c0_28, %c1, %c0_29, %c0_30], %53 {strides = array<i32>} : memref<2x8x4x16xf32, #tpu.memory_space<vmem>>, vector<2x1x4x16xf32>,
    %54 = vector.extract_strided_slice %22 {offsets = [0, 0, 8], sizes = [4, 2, 4], strides = [1, 1, 1]} : vector<4x2x32xbf16> to vector<4x2x4xbf16>
    %55 = vector.extract_strided_slice %23 {offsets = [0, 0, 8], sizes = [4, 2, 4], strides = [1, 1, 1]} : vector<4x2x32xbf16> to vector<4x2x4xbf16>
    %56 = tpu.concatenate %54, %55 in 2 : vector<4x2x4xbf16>, vector<4x2x4xbf16> -> vector<4x2x8xbf16>
    %c8 = arith.constant 8 : index
    %c0_31 = arith.constant 0 : index
    %c0_32 = arith.constant 0 : index
    %57 = vector.load %arg4[%c8, %c0_31, %c0_32] : memref<32x8x8xbf16, #tpu.memory_space<vmem>>, vector<4x8x8xbf16>
    "tpu.trace_start"() <{level = 10 : i32, message = "mbe,meo->mbo"}> : () -> ()
    %cst_33 = arith.constant dense<0.000000e+00> : vector<4x2x8xf32>
    %58 = tpu.matmul %56, %57, %cst_33 {dimension_numbers = #tpu.dot_dimension_numbers<[2], [1], [1], [2], [0, 0, 0, 1, 1, 2], [0], [0]>} : vector<4x2x8xbf16>, vector<4x8x8xbf16>, vector<4x2x8xf32> -> vector<4x2x8xf32>
    "tpu.trace_stop"() : () -> ()
    %59 = arith.truncf %58 : vector<4x2x8xf32> to vector<4x2x8xbf16>
    %60 = vector.extract_strided_slice %59 {offsets = [0, 0, 0], sizes = [4, 2, 4], strides = [1, 1, 1]} : vector<4x2x8xbf16> to vector<4x2x4xbf16>
    %61 = vector.extract_strided_slice %59 {offsets = [0, 0, 4], sizes = [4, 2, 4], strides = [1, 1, 1]} : vector<4x2x8xbf16> to vector<4x2x4xbf16>
    %62 = tpu.concatenate %60, %61 in 0 : vector<4x2x4xbf16>, vector<4x2x4xbf16> -> vector<8x2x4xbf16>
    %63 = vector.shape_cast %62 : vector<8x2x4xbf16> to vector<8x8xbf16>
    %cst_34 = arith.constant dense<0.000000e+00> : vector<8x16xf32>
    %64 = tpu.matmul %63, %1, %cst_34 {dimension_numbers = #tpu.dot_dimension_numbers<[0], [0], [1], [1], [0, 1, 1, 1], [], []>} : vector<8x8xbf16>, vector<8x16xbf16>, vector<8x16xf32> -> vector<8x16xf32>
    %65 = vector.shape_cast %64 : vector<8x16xf32> to vector<2x4x16xf32>
    %c0_35 = arith.constant 0 : index
    %c2 = arith.constant 2 : index
    %c0_36 = arith.constant 0 : index
    %c0_37 = arith.constant 0 : index
    %66 = vector.load %arg6[%c0_35, %c2, %c0_36, %c0_37] : memref<2x8x4x16xf32, #tpu.memory_space<vmem>>, vector<2x1x4x16xf32>
    %67 = vector.shape_cast %66 : vector<2x1x4x16xf32> to vector<2x4x16xf32>
    %68 = vector.shape_cast %65 : vector<2x4x16xf32> to vector<2x1x4x16xf32>
    tpu.vector_store %arg6[%c0_35, %c2, %c0_36, %c0_37], %68 {strides = array<i32>} : memref<2x8x4x16xf32, #tpu.memory_space<vmem>>, vector<2x1x4x16xf32>,
    %69 = vector.extract_strided_slice %22 {offsets = [0, 0, 12], sizes = [4, 2, 4], strides = [1, 1, 1]} : vector<4x2x32xbf16> to vector<4x2x4xbf16>
    %70 = vector.extract_strided_slice %23 {offsets = [0, 0, 12], sizes = [4, 2, 4], strides = [1, 1, 1]} : vector<4x2x32xbf16> to vector<4x2x4xbf16>
    %71 = tpu.concatenate %69, %70 in 2 : vector<4x2x4xbf16>, vector<4x2x4xbf16> -> vector<4x2x8xbf16>
    %c12 = arith.constant 12 : index
    %c0_38 = arith.constant 0 : index
    %c0_39 = arith.constant 0 : index
    %72 = vector.load %arg4[%c12, %c0_38, %c0_39] : memref<32x8x8xbf16, #tpu.memory_space<vmem>>, vector<4x8x8xbf16>
    "tpu.trace_start"() <{level = 10 : i32, message = "mbe,meo->mbo"}> : () -> ()
    %cst_40 = arith.constant dense<0.000000e+00> : vector<4x2x8xf32>
    %73 = tpu.matmul %71, %72, %cst_40 {dimension_numbers = #tpu.dot_dimension_numbers<[2], [1], [1], [2], [0, 0, 0, 1, 1, 2], [0], [0]>} : vector<4x2x8xbf16>, vector<4x8x8xbf16>, vector<4x2x8xf32> -> vector<4x2x8xf32>
    "tpu.trace_stop"() : () -> ()
    %74 = arith.truncf %73 : vector<4x2x8xf32> to vector<4x2x8xbf16>
    %75 = vector.extract_strided_slice %74 {offsets = [0, 0, 0], sizes = [4, 2, 4], strides = [1, 1, 1]} : vector<4x2x8xbf16> to vector<4x2x4xbf16>
    %76 = vector.extract_strided_slice %74 {offsets = [0, 0, 4], sizes = [4, 2, 4], strides = [1, 1, 1]} : vector<4x2x8xbf16> to vector<4x2x4xbf16>
    %77 = tpu.concatenate %75, %76 in 0 : vector<4x2x4xbf16>, vector<4x2x4xbf16> -> vector<8x2x4xbf16>
    %78 = vector.shape_cast %77 : vector<8x2x4xbf16> to vector<8x8xbf16>
    %cst_41 = arith.constant dense<0.000000e+00> : vector<8x16xf32>
    %79 = tpu.matmul %78, %1, %cst_41 {dimension_numbers = #tpu.dot_dimension_numbers<[0], [0], [1], [1], [0, 1, 1, 1], [], []>} : vector<8x8xbf16>, vector<8x16xbf16>, vector<8x16xf32> -> vector<8x16xf32>
    %80 = vector.shape_cast %79 : vector<8x16xf32> to vector<2x4x16xf32>
    %c0_42 = arith.constant 0 : index
    %c3 = arith.constant 3 : index
    %c0_43 = arith.constant 0 : index
    %c0_44 = arith.constant 0 : index
    %81 = vector.load %arg6[%c0_42, %c3, %c0_43, %c0_44] : memref<2x8x4x16xf32, #tpu.memory_space<vmem>>, vector<2x1x4x16xf32>
    %82 = vector.shape_cast %81 : vector<2x1x4x16xf32> to vector<2x4x16xf32>
    %83 = vector.shape_cast %80 : vector<2x4x16xf32> to vector<2x1x4x16xf32>
    tpu.vector_store %arg6[%c0_42, %c3, %c0_43, %c0_44], %83 {strides = array<i32>} : memref<2x8x4x16xf32, #tpu.memory_space<vmem>>, vector<2x1x4x16xf32>,
    %84 = vector.extract_strided_slice %22 {offsets = [0, 0, 16], sizes = [4, 2, 4], strides = [1, 1, 1]} : vector<4x2x32xbf16> to vector<4x2x4xbf16>
    %85 = vector.extract_strided_slice %23 {offsets = [0, 0, 16], sizes = [4, 2, 4], strides = [1, 1, 1]} : vector<4x2x32xbf16> to vector<4x2x4xbf16>
    %86 = tpu.concatenate %84, %85 in 2 : vector<4x2x4xbf16>, vector<4x2x4xbf16> -> vector<4x2x8xbf16>
    %c16 = arith.constant 16 : index
    %c0_45 = arith.constant 0 : index
    %c0_46 = arith.constant 0 : index
    %87 = vector.load %arg4[%c16, %c0_45, %c0_46] : memref<32x8x8xbf16, #tpu.memory_space<vmem>>, vector<4x8x8xbf16>
    "tpu.trace_start"() <{level = 10 : i32, message = "mbe,meo->mbo"}> : () -> ()
    %cst_47 = arith.constant dense<0.000000e+00> : vector<4x2x8xf32>
    %88 = tpu.matmul %86, %87, %cst_47 {dimension_numbers = #tpu.dot_dimension_numbers<[2], [1], [1], [2], [0, 0, 0, 1, 1, 2], [0], [0]>} : vector<4x2x8xbf16>, vector<4x8x8xbf16>, vector<4x2x8xf32> -> vector<4x2x8xf32>
    "tpu.trace_stop"() : () -> ()
    %89 = arith.truncf %88 : vector<4x2x8xf32> to vector<4x2x8xbf16>
    %90 = vector.extract_strided_slice %89 {offsets = [0, 0, 0], sizes = [4, 2, 4], strides = [1, 1, 1]} : vector<4x2x8xbf16> to vector<4x2x4xbf16>
    %91 = vector.extract_strided_slice %89 {offsets = [0, 0, 4], sizes = [4, 2, 4], strides = [1, 1, 1]} : vector<4x2x8xbf16> to vector<4x2x4xbf16>
    %92 = tpu.concatenate %90, %91 in 0 : vector<4x2x4xbf16>, vector<4x2x4xbf16> -> vector<8x2x4xbf16>
    %93 = vector.shape_cast %92 : vector<8x2x4xbf16> to vector<8x8xbf16>
    %cst_48 = arith.constant dense<0.000000e+00> : vector<8x16xf32>
    %94 = tpu.matmul %93, %1, %cst_48 {dimension_numbers = #tpu.dot_dimension_numbers<[0], [0], [1], [1], [0, 1, 1, 1], [], []>} : vector<8x8xbf16>, vector<8x16xbf16>, vector<8x16xf32> -> vector<8x16xf32>
    %95 = vector.shape_cast %94 : vector<8x16xf32> to vector<2x4x16xf32>
    %c0_49 = arith.constant 0 : index
    %c4_50 = arith.constant 4 : index
    %c0_51 = arith.constant 0 : index
    %c0_52 = arith.constant 0 : index
    %96 = vector.load %arg6[%c0_49, %c4_50, %c0_51, %c0_52] : memref<2x8x4x16xf32, #tpu.memory_space<vmem>>, vector<2x1x4x16xf32>
    %97 = vector.shape_cast %96 : vector<2x1x4x16xf32> to vector<2x4x16xf32>
    %98 = vector.shape_cast %95 : vector<2x4x16xf32> to vector<2x1x4x16xf32>
    tpu.vector_store %arg6[%c0_49, %c4_50, %c0_51, %c0_52], %98 {strides = array<i32>} : memref<2x8x4x16xf32, #tpu.memory_space<vmem>>, vector<2x1x4x16xf32>,
    %99 = vector.extract_strided_slice %22 {offsets = [0, 0, 20], sizes = [4, 2, 4], strides = [1, 1, 1]} : vector<4x2x32xbf16> to vector<4x2x4xbf16>
    %100 = vector.extract_strided_slice %23 {offsets = [0, 0, 20], sizes = [4, 2, 4], strides = [1, 1, 1]} : vector<4x2x32xbf16> to vector<4x2x4xbf16>
    %101 = tpu.concatenate %99, %100 in 2 : vector<4x2x4xbf16>, vector<4x2x4xbf16> -> vector<4x2x8xbf16>
    %c20 = arith.constant 20 : index
    %c0_53 = arith.constant 0 : index
    %c0_54 = arith.constant 0 : index
    %102 = vector.load %arg4[%c20, %c0_53, %c0_54] : memref<32x8x8xbf16, #tpu.memory_space<vmem>>, vector<4x8x8xbf16>
    "tpu.trace_start"() <{level = 10 : i32, message = "mbe,meo->mbo"}> : () -> ()
    %cst_55 = arith.constant dense<0.000000e+00> : vector<4x2x8xf32>
    %103 = tpu.matmul %101, %102, %cst_55 {dimension_numbers = #tpu.dot_dimension_numbers<[2], [1], [1], [2], [0, 0, 0, 1, 1, 2], [0], [0]>} : vector<4x2x8xbf16>, vector<4x8x8xbf16>, vector<4x2x8xf32> -> vector<4x2x8xf32>
    "tpu.trace_stop"() : () -> ()
    %104 = arith.truncf %103 : vector<4x2x8xf32> to vector<4x2x8xbf16>
    %105 = vector.extract_strided_slice %104 {offsets = [0, 0, 0], sizes = [4, 2, 4], strides = [1, 1, 1]} : vector<4x2x8xbf16> to vector<4x2x4xbf16>
    %106 = vector.extract_strided_slice %104 {offsets = [0, 0, 4], sizes = [4, 2, 4], strides = [1, 1, 1]} : vector<4x2x8xbf16> to vector<4x2x4xbf16>
    %107 = tpu.concatenate %105, %106 in 0 : vector<4x2x4xbf16>, vector<4x2x4xbf16> -> vector<8x2x4xbf16>
    %108 = vector.shape_cast %107 : vector<8x2x4xbf16> to vector<8x8xbf16>
    %cst_56 = arith.constant dense<0.000000e+00> : vector<8x16xf32>
    %109 = tpu.matmul %108, %1, %cst_56 {dimension_numbers = #tpu.dot_dimension_numbers<[0], [0], [1], [1], [0, 1, 1, 1], [], []>} : vector<8x8xbf16>, vector<8x16xbf16>, vector<8x16xf32> -> vector<8x16xf32>
    %110 = vector.shape_cast %109 : vector<8x16xf32> to vector<2x4x16xf32>
    %c0_57 = arith.constant 0 : index
    %c5 = arith.constant 5 : index
    %c0_58 = arith.constant 0 : index
    %c0_59 = arith.constant 0 : index
    %111 = vector.load %arg6[%c0_57, %c5, %c0_58, %c0_59] : memref<2x8x4x16xf32, #tpu.memory_space<vmem>>, vector<2x1x4x16xf32>
    %112 = vector.shape_cast %111 : vector<2x1x4x16xf32> to vector<2x4x16xf32>
    %113 = vector.shape_cast %110 : vector<2x4x16xf32> to vector<2x1x4x16xf32>
    tpu.vector_store %arg6[%c0_57, %c5, %c0_58, %c0_59], %113 {strides = array<i32>} : memref<2x8x4x16xf32, #tpu.memory_space<vmem>>, vector<2x1x4x16xf32>,
    %114 = vector.extract_strided_slice %22 {offsets = [0, 0, 24], sizes = [4, 2, 4], strides = [1, 1, 1]} : vector<4x2x32xbf16> to vector<4x2x4xbf16>
    %115 = vector.extract_strided_slice %23 {offsets = [0, 0, 24], sizes = [4, 2, 4], strides = [1, 1, 1]} : vector<4x2x32xbf16> to vector<4x2x4xbf16>
    %116 = tpu.concatenate %114, %115 in 2 : vector<4x2x4xbf16>, vector<4x2x4xbf16> -> vector<4x2x8xbf16>
    %c24 = arith.constant 24 : index
    %c0_60 = arith.constant 0 : index
    %c0_61 = arith.constant 0 : index
    %117 = vector.load %arg4[%c24, %c0_60, %c0_61] : memref<32x8x8xbf16, #tpu.memory_space<vmem>>, vector<4x8x8xbf16>
    "tpu.trace_start"() <{level = 10 : i32, message = "mbe,meo->mbo"}> : () -> ()
    %cst_62 = arith.constant dense<0.000000e+00> : vector<4x2x8xf32>
    %118 = tpu.matmul %116, %117, %cst_62 {dimension_numbers = #tpu.dot_dimension_numbers<[2], [1], [1], [2], [0, 0, 0, 1, 1, 2], [0], [0]>} : vector<4x2x8xbf16>, vector<4x8x8xbf16>, vector<4x2x8xf32> -> vector<4x2x8xf32>
    "tpu.trace_stop"() : () -> ()
    %119 = arith.truncf %118 : vector<4x2x8xf32> to vector<4x2x8xbf16>
    %120 = vector.extract_strided_slice %119 {offsets = [0, 0, 0], sizes = [4, 2, 4], strides = [1, 1, 1]} : vector<4x2x8xbf16> to vector<4x2x4xbf16>
    %121 = vector.extract_strided_slice %119 {offsets = [0, 0, 4], sizes = [4, 2, 4], strides = [1, 1, 1]} : vector<4x2x8xbf16> to vector<4x2x4xbf16>
    %122 = tpu.concatenate %120, %121 in 0 : vector<4x2x4xbf16>, vector<4x2x4xbf16> -> vector<8x2x4xbf16>
    %123 = vector.shape_cast %122 : vector<8x2x4xbf16> to vector<8x8xbf16>
    %cst_63 = arith.constant dense<0.000000e+00> : vector<8x16xf32>
    %124 = tpu.matmul %123, %1, %cst_63 {dimension_numbers = #tpu.dot_dimension_numbers<[0], [0], [1], [1], [0, 1, 1, 1], [], []>} : vector<8x8xbf16>, vector<8x16xbf16>, vector<8x16xf32> -> vector<8x16xf32>
    %125 = vector.shape_cast %124 : vector<8x16xf32> to vector<2x4x16xf32>
    %c0_64 = arith.constant 0 : index
    %c6 = arith.constant 6 : index
    %c0_65 = arith.constant 0 : index
    %c0_66 = arith.constant 0 : index
    %126 = vector.load %arg6[%c0_64, %c6, %c0_65, %c0_66] : memref<2x8x4x16xf32, #tpu.memory_space<vmem>>, vector<2x1x4x16xf32>
    %127 = vector.shape_cast %126 : vector<2x1x4x16xf32> to vector<2x4x16xf32>
    %128 = vector.shape_cast %125 : vector<2x4x16xf32> to vector<2x1x4x16xf32>
    tpu.vector_store %arg6[%c0_64, %c6, %c0_65, %c0_66], %128 {strides = array<i32>} : memref<2x8x4x16xf32, #tpu.memory_space<vmem>>, vector<2x1x4x16xf32>,
    %129 = vector.extract_strided_slice %22 {offsets = [0, 0, 28], sizes = [4, 2, 4], strides = [1, 1, 1]} : vector<4x2x32xbf16> to vector<4x2x4xbf16>
    %130 = vector.extract_strided_slice %23 {offsets = [0, 0, 28], sizes = [4, 2, 4], strides = [1, 1, 1]} : vector<4x2x32xbf16> to vector<4x2x4xbf16>
    %131 = tpu.concatenate %129, %130 in 2 : vector<4x2x4xbf16>, vector<4x2x4xbf16> -> vector<4x2x8xbf16>
    %c28 = arith.constant 28 : index
    %c0_67 = arith.constant 0 : index
    %c0_68 = arith.constant 0 : index
    %132 = vector.load %arg4[%c28, %c0_67, %c0_68] : memref<32x8x8xbf16, #tpu.memory_space<vmem>>, vector<4x8x8xbf16>
    "tpu.trace_start"() <{level = 10 : i32, message = "mbe,meo->mbo"}> : () -> ()
    %cst_69 = arith.constant dense<0.000000e+00> : vector<4x2x8xf32>
    %133 = tpu.matmul %131, %132, %cst_69 {dimension_numbers = #tpu.dot_dimension_numbers<[2], [1], [1], [2], [0, 0, 0, 1, 1, 2], [0], [0]>} : vector<4x2x8xbf16>, vector<4x8x8xbf16>, vector<4x2x8xf32> -> vector<4x2x8xf32>
    "tpu.trace_stop"() : () -> ()
    %134 = arith.truncf %133 : vector<4x2x8xf32> to vector<4x2x8xbf16>
    %135 = vector.extract_strided_slice %134 {offsets = [0, 0, 0], sizes = [4, 2, 4], strides = [1, 1, 1]} : vector<4x2x8xbf16> to vector<4x2x4xbf16>
    %136 = vector.extract_strided_slice %134 {offsets = [0, 0, 4], sizes = [4, 2, 4], strides = [1, 1, 1]} : vector<4x2x8xbf16> to vector<4x2x4xbf16>
    %137 = tpu.concatenate %135, %136 in 0 : vector<4x2x4xbf16>, vector<4x2x4xbf16> -> vector<8x2x4xbf16>
    %138 = vector.shape_cast %137 : vector<8x2x4xbf16> to vector<8x8xbf16>
    %cst_70 = arith.constant dense<0.000000e+00> : vector<8x16xf32>
    %139 = tpu.matmul %138, %1, %cst_70 {dimension_numbers = #tpu.dot_dimension_numbers<[0], [0], [1], [1], [0, 1, 1, 1], [], []>} : vector<8x8xbf16>, vector<8x16xbf16>, vector<8x16xf32> -> vector<8x16xf32>
    %140 = vector.shape_cast %139 : vector<8x16xf32> to vector<2x4x16xf32>
    %c0_71 = arith.constant 0 : index
    %c7 = arith.constant 7 : index
    %c0_72 = arith.constant 0 : index
    %c0_73 = arith.constant 0 : index
    %141 = vector.load %arg6[%c0_71, %c7, %c0_72, %c0_73] : memref<2x8x4x16xf32, #tpu.memory_space<vmem>>, vector<2x1x4x16xf32>
    %142 = vector.shape_cast %141 : vector<2x1x4x16xf32> to vector<2x4x16xf32>
    %143 = vector.shape_cast %140 : vector<2x4x16xf32> to vector<2x1x4x16xf32>
    tpu.vector_store %arg6[%c0_71, %c7, %c0_72, %c0_73], %143 {strides = array<i32>} : memref<2x8x4x16xf32, #tpu.memory_space<vmem>>, vector<2x1x4x16xf32>,
    return
  }
  func.func @transform_0(%arg0: i32, %arg1: i32) -> (i32, i32, i32) {
    %c0_i32 = arith.constant 0 : i32
    %c0_i32_0 = arith.constant 0 : i32
    return %arg0, %c0_i32, %arg1 : i32, i32, i32
  }
  func.func @transform_1(%arg0: i32, %arg1: i32) -> (i32, i32) {
    %c0_i32 = arith.constant 0 : i32
    %c0_i32_0 = arith.constant 0 : i32
    %c0_i32_1 = arith.constant 0 : i32
    return %c0_i32, %c0_i32_0 : i32, i32
  }
  func.func @transform_2(%arg0: i32, %arg1: i32) -> (i32, i32, i32) {
    %c0_i32 = arith.constant 0 : i32
    %c0_i32_0 = arith.constant 0 : i32
    %c0_i32_1 = arith.constant 0 : i32
    return %arg1, %c0_i32, %c0_i32_0 : i32, i32, i32
  }
  func.func @transform_3(%arg0: i32, %arg1: i32) -> (i32, i32) {
    %c0_i32 = arith.constant 0 : i32
    %c0_i32_0 = arith.constant 0 : i32
    %c0_i32_1 = arith.constant 0 : i32
    return %c0_i32, %c0_i32_0 : i32, i32
  }
  func.func @transform_4(%arg0: i32, %arg1: i32) -> (i32, i32, i32, i32) {
    %c0_i32 = arith.constant 0 : i32
    %c0_i32_0 = arith.constant 0 : i32
    %c0_i32_1 = arith.constant 0 : i32
    return %arg0, %arg1, %c0_i32, %c0_i32_0 : i32, i32, i32, i32
  }
}

</mosaic_0001>

<llo_original>
// kernel: tpu_custom_call.1
$region0: #{tpu_custom_call.1}
  #allocation0 [shape = 'u32[]', space=smem, size = 0x4, offset = 0x4, fixed_abs, tag = 'smem constant byte address 0x4 - core index']
  #allocation1 [shape = 'u32[72,128]{1,0:T(1,128)}', space=vmem, size = 0x9000, scoped, tag = 'internal scratch']
  #allocation2 [shape = 'bf16[2,8,32]{2,1,0:T(8,128)(2,1)}', space=vmem, size = 0x1000, scoped, tag = 'scratch operand']
  %s0 = inlined_call_operand.vmem [shape: bf16[2,16,32], index: 0, kind: input, shape index: {}]
  %s1 = inlined_call_operand.vmem [shape: bf16[8,16], index: 1, kind: input, shape index: {}]
  %s2 = inlined_call_operand.vmem [shape: bf16[32,8,8], index: 2, kind: input, shape index: {}]
  %s3 = inlined_call_operand.vmem [shape: bf16[8,16], index: 3, kind: input, shape index: {}]
  %s4 = inlined_call_operand.hbm [shape: f32[2,8,4,16], index: 4, kind: output, shape index: {}]
  %s5 = sld [smem:[#allocation0]]
  $region26: #{tpu_custom_call.1} parent=0
    _
  %s7 = ssub.s32 1, %s5
  %s8 = scalar_select 0, %s7, %s5
  $region1: #{tpu_custom_call.1} parent=0
    #allocation3 [shape = 'u8[32768]{0}', space=vmem, size = 0x8000, scoped, tag = 'output window, operand 0, single buffered']
    #allocation4 [shape = 's32[1]{0}', space=sflag, size = 0x4, scoped, tag = 'scoped memory for tpu_custom_call.1']
    %9 = vsyncpa [#allocation4], 0
    // Predicated region
    $region2: #{tpu_custom_call.1} parent=1 // pred_check
      _
    $region3: #{tpu_custom_call.1} parent=1 // pred_check_branch
      %11 = sbr.rel (0) target = $region5
    $region4: #{tpu_custom_call.1} parent=1 // pred_region
      _
    $region5: #{tpu_custom_call.1} parent=1 // pred_fallthru
      _
    // Predicated region
    $region6: #{tpu_custom_call.1} parent=1 // pred_check
      _
    $region7: #{tpu_custom_call.1} parent=1 // pred_check_branch
      %13 = sbr.rel (0) target = $region9
    $region8: #{tpu_custom_call.1} parent=1 // pred_region
      _
    $region9: #{tpu_custom_call.1} parent=1 // pred_fallthru
      _
    // Predicated region
    $region10: #{tpu_custom_call.1} parent=1 // pred_check
      _
    $region11: #{tpu_custom_call.1} parent=1 // pred_check_branch
      %15 = sbr.rel (0) target = $region13
    $region12: #{tpu_custom_call.1} parent=1 // pred_region
      _
    $region13: #{tpu_custom_call.1} parent=1 // pred_fallthru
      _
    // Predicated region
    $region14: #{tpu_custom_call.1} parent=1 // pred_check
      _
    $region15: #{tpu_custom_call.1} parent=1 // pred_check_branch
      %17 = sbr.rel (0) target = $region17
    $region16: #{tpu_custom_call.1} parent=1 // pred_region
      _
    $region17: #{tpu_custom_call.1} parent=1 // pred_fallthru
      _
    %v19 = vld [vmem:[%s1] sm:$0xf]
    %v20 = vld [vmem:[%s3] sm:$0xf]
    %v21 = vld [vmem:[%s0] sm:$0xf]
    %v22 = vld [vmem:[%s0 + $0x4] sm:$0xf]
    %v25 = vunpack.c.l.b16 %v21
    %v26 = vunpack.c.l.b16 %v22
    %v27 = vpack.c.b16 %v26, %v25
    %vm29 = vcmask 130048
    %v31 = vsel %vm29, %v19, 0
    %33 = vmatpush.bf16.msra.mxu0 0
    %34 = vmatpush.bf16.msra.mxu0 0
    %35 = vmatpush.bf16.msra.mxu0 0
    %36 = vmatpush.bf16.msra.mxu0 0
    %37 = vmatpush.bf16.msra.mxu0 0
    %38 = vmatpush.bf16.msra.mxu0 0
    %39 = vmatpush.bf16.msra.mxu0 0
    %40 = vmatpush.bf16.msra.mxu0 %v27
    %41 = vmatmul.bf16.gmra.mxu0 %v31
    %v42 = vpop.f32.mrf.mxu0
    %v43 = vadd.f32 0.0, %v42
    %v44 = vpop.f32.mrf.mxu0
    %45 = vdwg.mxu0
    %v46 = vpack.c.bf16 %v43, %v43
    %vm47 = vcmask 257024
    %48 = vst.msk [vmem:[#allocation2] sm:$0xf] %vm47, %v46
    %s49 = scalar_lea.vmem %s0, 8
    %v50 = vld [vmem:[%s49] sm:$0xf]
    %v51 = vld [vmem:[%s49 + $0x4] sm:$0xf]
    %v54 = vunpack.c.l.b16 %v50
    %v55 = vunpack.c.l.b16 %v51
    %v56 = vpack.c.b16 %v55, %v54
    %58 = vmatpush.bf16.msra.mxu0 0
    %59 = vmatpush.bf16.msra.mxu0 0
    %60 = vmatpush.bf16.msra.mxu0 0
    %61 = vmatpush.bf16.msra.mxu0 0
    %62 = vmatpush.bf16.msra.mxu0 0
    %63 = vmatpush.bf16.msra.mxu0 0
    %64 = vmatpush.bf16.msra.mxu0 0
    %65 = vmatpush.bf16.msra.mxu0 %v56
    %66 = vmatmul.bf16.gmra.mxu0 %v31
    %v67 = vpop.f32.mrf.mxu0
    %v68 = vadd.f32 0.0, %v67
    %v69 = vpop.f32.mrf.mxu0
    %70 = vdwg.mxu0
    %v71 = vpack.c.bf16 %v68, %v68
    %s72 = scalar_lea.vmem [#allocation2], 4
    %73 = vst.msk [vmem:[%s72] sm:$0xf] %vm47, %v71
    %v74 = vld [vmem:[#allocation2] sm:$0xf]
    %v75 = vld [vmem:[#allocation2 + $0x4] sm:$0xf]
    %v78 = vpack.i.b16 %v75, %v74
    %v79 = vshrl.u32 %v74, 16
    %v80 = vshrl.u32 %v75, 16
    %v81 = vpack.i.b16 %v80, %v79
    %v84 = vunpack.c.l.s4 1983009808
    %v85 = vunpack.c.0.s8 %v84
    %v86 = vperm.slane %v78, %v85
    %v87 = vrot.slane %v86, 4
    %vm88 = vcmask 1047556
    %v89 = vsel %vm88, 0, %v87
    %v91 = vunpack.c.l.s4 1934713408
    %v92 = vunpack.c.0.s8 %v91
    %v93 = vperm.slane %v86, %v92
    %v95 = vunpack.c.l.s4 1934713408
    %v96 = vunpack.c.0.s8 %v95
    %v97 = vperm.slane %v89, %v96
    %v98 = vrot.slane %v93, 4
    %v99 = vsel %vm88, 0, %v98
    %v100 = vrot.slane %v97, 4
    %v101 = vsel %vm88, 0, %v100
    %v104 = vunpack.c.l.s4 1983009808
    %v105 = vunpack.c.0.s8 %v104
    %v106 = vperm.slane %v81, %v105
    %v107 = vrot.slane %v106, 4
    %v108 = vsel %vm88, 0, %v107
    %v110 = vunpack.c.l.s4 1934713408
    %v111 = vunpack.c.0.s8 %v110
    %v112 = vperm.slane %v106, %v111
    %v114 = vunpack.c.l.s4 1934713408
    %v115 = vunpack.c.0.s8 %v114
    %v116 = vperm.slane %v108, %v115
    %v117 = vrot.slane %v112, 4
    %v118 = vsel %vm88, 0, %v117
    %v119 = vrot.slane %v116, 4
    %v120 = vsel %vm88, 0, %v119
    %v125 = vunpack.c.l.b16 %v97
    %v126 = vunpack.c.l.b16 %v116
    %v127 = vunpack.c.l.b16 %v101
    %v128 = vunpack.c.l.b16 %v120
    %v129 = vpack.c.b16 %v125, %v125
    %v130 = vpack.c.b16 %v126, %v126
    %v131 = vpack.c.b16 %v127, %v127
    %v132 = vpack.c.b16 %v128, %v128
    %133 = vrot.lane.b32.xlu0 %v129, 4
    %v134 = vpop.permute.xlu0 %133
    %135 = vrot.lane.b32.xlu0 %v130, 4
    %v136 = vpop.permute.xlu0 %135
    %137 = vrot.lane.b32.xlu0 %v131, 4
    %v138 = vpop.permute.xlu0 %137
    %139 = vrot.lane.b32.xlu0 %v132, 4
    %v140 = vpop.permute.xlu0 %139
    %vm141 = vcmask 31744
    %v144 = vsel %vm141, %v93, %v134
    %v147 = vsel %vm141, %v112, %v136
    %v150 = vsel %vm141, %v99, %v138
    %v153 = vsel %vm141, %v118, %v140
    %v154 = vld [vmem:[%s2] sm:$0xf]
    %v155 = vld [vmem:[%s2 + $0x4] sm:$0xf]
    %v156 = vld [vmem:[%s2 + $0x8] sm:$0xf]
    %v157 = vld [vmem:[%s2 + $0xc] sm:$0xf]
    %vm158 = vcmask 64512
    %v159 = vsel %vm158, %v144, 0
    %vm161 = vcmask 1043456
    %v163 = vsel %vm161, %v154, 0
    %165 = vmatpush.bf16.msra.mxu0 0
    %166 = vmatpush.bf16.msra.mxu0 0
    %167 = vmatpush.bf16.msra.mxu0 0
    %168 = vmatpush.bf16.msra.mxu0 0
    %169 = vmatpush.bf16.msra.mxu0 0
    %170 = vmatpush.bf16.msra.mxu0 0
    %171 = vmatpush.bf16.msra.mxu0 0
    %172 = vmatpush.bf16.msra.mxu0 %v163
    %173 = vmatmul.bf16.gmra.mxu0 %v159
    %v174 = vpop.f32.mrf.mxu0
    %v175 = vadd.f32 0.0, %v174
    %v176 = vpop.f32.mrf.mxu0
    %177 = vdwg.mxu0
    %v178 = vsel %vm158, %v147, 0
    %v181 = vsel %vm161, %v155, 0
    %183 = vmatpush.bf16.msra.mxu0 0
    %184 = vmatpush.bf16.msra.mxu0 0
    %185 = vmatpush.bf16.msra.mxu0 0
    %186 = vmatpush.bf16.msra.mxu0 0
    %187 = vmatpush.bf16.msra.mxu0 0
    %188 = vmatpush.bf16.msra.mxu0 0
    %189 = vmatpush.bf16.msra.mxu0 0
    %190 = vmatpush.bf16.msra.mxu0 %v181
    %191 = vmatmul.bf16.gmra.mxu0 %v178
    %v192 = vpop.f32.mrf.mxu0
    %v193 = vadd.f32 0.0, %v192
    %v194 = vpop.f32.mrf.mxu0
    %195 = vdwg.mxu0
    %v196 = vsel %vm158, %v150, 0
    %v199 = vsel %vm161, %v156, 0
    %201 = vmatpush.bf16.msra.mxu0 0
    %202 = vmatpush.bf16.msra.mxu0 0
    %203 = vmatpush.bf16.msra.mxu0 0
    %204 = vmatpush.bf16.msra.mxu0 0
    %205 = vmatpush.bf16.msra.mxu0 0
    %206 = vmatpush.bf16.msra.mxu0 0
    %207 = vmatpush.bf16.msra.mxu0 0
    %208 = vmatpush.bf16.msra.mxu0 %v199
    %209 = vmatmul.bf16.gmra.mxu0 %v196
    %v210 = vpop.f32.mrf.mxu0
    %v211 = vadd.f32 0.0, %v210
    %v212 = vpop.f32.mrf.mxu0
    %213 = vdwg.mxu0
    %v214 = vsel %vm158, %v153, 0
    %v217 = vsel %vm161, %v157, 0
    %219 = vmatpush.bf16.msra.mxu0 0
    %220 = vmatpush.bf16.msra.mxu0 0
    %221 = vmatpush.bf16.msra.mxu0 0
    %222 = vmatpush.bf16.msra.mxu0 0
    %223 = vmatpush.bf16.msra.mxu0 0
    %224 = vmatpush.bf16.msra.mxu0 0
    %225 = vmatpush.bf16.msra.mxu0 0
    %226 = vmatpush.bf16.msra.mxu0 %v217
    %227 = vmatmul.bf16.gmra.mxu0 %v214
    %v228 = vpop.f32.mrf.mxu0
    %v229 = vadd.f32 0.0, %v228
    %v230 = vpop.f32.mrf.mxu0
    %231 = vdwg.mxu0
    %v232 = vpack.c.bf16 %v175, %v175
    %v233 = vpack.c.bf16 %v193, %v193
    %v234 = vpack.c.bf16 %v211, %v211
    %v235 = vpack.c.bf16 %v229, %v229
    %240 = vrot.lane.b32.xlu0 %v232, 124
    %v241 = vpop.permute.xlu0 %240
    %242 = vrot.lane.b32.xlu0 %v233, 124
    %v243 = vpop.permute.xlu0 %242
    %244 = vrot.lane.b32.xlu0 %v234, 124
    %v245 = vpop.permute.xlu0 %244
    %246 = vrot.lane.b32.xlu0 %v235, 124
    %v247 = vpop.permute.xlu0 %246
    %v252 = vrot.slane %v241, 4
    %v253 = vsel %vm88, %v252, %v232
    %v255 = vunpack.c.l.s4 1983009808
    %v256 = vunpack.c.0.s8 %v255
    %v257 = vperm.slane %v253, %v256
    %v258 = vrot.slane %v245, 4
    %v259 = vsel %vm88, %v258, %v234
    %v261 = vunpack.c.l.s4 1983009808
    %v262 = vunpack.c.0.s8 %v261
    %v263 = vperm.slane %v259, %v262
    %v264 = vrot.slane %v263, 4
    %v265 = vsel %vm88, %v264, %v257
    %v267 = vunpack.c.l.s4 1934713408
    %v268 = vunpack.c.0.s8 %v267
    %v269 = vperm.slane %v265, %v268
    %v270 = vrot.slane %v243, 4
    %v271 = vsel %vm88, %v270, %v233
    %v273 = vunpack.c.l.s4 1983009808
    %v274 = vunpack.c.0.s8 %v273
    %v275 = vperm.slane %v271, %v274
    %v276 = vrot.slane %v247, 4
    %v277 = vsel %vm88, %v276, %v235
    %v279 = vunpack.c.l.s4 1983009808
    %v280 = vunpack.c.0.s8 %v279
    %v281 = vperm.slane %v277, %v280
    %v282 = vrot.slane %v281, 4
    %v283 = vsel %vm88, %v282, %v275
    %v285 = vunpack.c.l.s4 1934713408
    %v286 = vunpack.c.0.s8 %v285
    %v287 = vperm.slane %v283, %v286
    %v290 = vpack.i.b16 %v287, %v269
    %v291 = vshrl.u32 %v269, 16
    %v292 = vshrl.u32 %v287, 16
    %v293 = vpack.i.b16 %v292, %v291
    %v294 = vunpack.c.l.b16 %v293
    %v295 = vpack.c.b16 %v294, %v294
    %296 = vrot.lane.b32.xlu0 %v295, 4
    %v297 = vpop.permute.xlu0 %296
    %v300 = vsel %vm141, %v290, %v297
    %302 = vxpose.xlu0.c.b16.start [1/8] %v300, 128
    %303 = vxpose.xlu0.c.b16.cont [2/8] 0, 128
    %304 = vxpose.xlu0.c.b16.cont [3/8] 0, 128
    %305 = vxpose.xlu0.c.b16.cont [4/8] 0, 128
    %306 = vxpose.xlu0.c.b16.cont [5/8] 0, 128
    %307 = vxpose.xlu0.c.b16.cont [6/8] 0, 128
    %308 = vxpose.xlu0.c.b16.cont [7/8] 0, 128
    %309 = vxpose.xlu0.c.b16.end [8/8] 0, 128
    %v310 = vpop.trf.xlu0
    %v311 = vpop.trf.xlu0
    %v312 = vpop.trf.xlu0
    %v313 = vpop.trf.xlu0
    %v314 = vpop.trf.xlu0
    %v315 = vpop.trf.xlu0
    %v316 = vpop.trf.xlu0
    %v317 = vpop.trf.xlu0
    %v319 = vsel %vm158, %v310, 0
    %v322 = vsel %vm161, %v20, 0
    %324 = vmatpush.bf16.msra.mxu0 0
    %325 = vmatpush.bf16.msra.mxu0 0
    %326 = vmatpush.bf16.msra.mxu0 0
    %327 = vmatpush.bf16.msra.mxu0 0
    %328 = vmatpush.bf16.msra.mxu0 0
    %329 = vmatpush.bf16.msra.mxu0 0
    %330 = vmatpush.bf16.msra.mxu0 0
    %331 = vmatpush.bf16.msra.mxu0 %v322
    %332 = vmatmul.bf16.gmra.mxu0 %v319
    %v333 = vpop.f32.mrf.mxu0
    %v334 = vadd.f32 0.0, %v333
    %v335 = vpop.f32.mrf.mxu0
    %336 = vdwg.mxu0
    %v338 = vrot.slane %v334, 4
    %vm340 = vcmask 125952
    %341 = vst.msk [vmem:[#allocation3] sm:$0xf] %vm340, %v334
    %342 = vst.msk [vmem:[#allocation3 + $0x20] sm:$0xf] %vm340, %v338
    %v347 = vunpack.c.l.b16 %v93
    %v348 = vunpack.c.l.b16 %v112
    %v349 = vunpack.c.l.b16 %v99
    %v350 = vunpack.c.l.b16 %v118
    %v351 = vpack.c.b16 %v347, %v347
    %v352 = vpack.c.b16 %v348, %v348
    %v353 = vpack.c.b16 %v349, %v349
    %v354 = vpack.c.b16 %v350, %v350
    %355 = vrot.lane.b32.xlu0 %v351, 124
    %v356 = vpop.permute.xlu0 %355
    %357 = vrot.lane.b32.xlu0 %v352, 124
    %v358 = vpop.permute.xlu0 %357
    %359 = vrot.lane.b32.xlu0 %v353, 124
    %v360 = vpop.permute.xlu0 %359
    %361 = vrot.lane.b32.xlu0 %v354, 124
    %v362 = vpop.permute.xlu0 %361
    %v365 = vsel %vm141, %v356, %v97
    %v368 = vsel %vm141, %v358, %v116
    %v371 = vsel %vm141, %v360, %v101
    %v374 = vsel %vm141, %v362, %v120
    %s375 = scalar_lea.vmem %s2, 16
    %v376 = vld [vmem:[%s375] sm:$0xf]
    %v377 = vld [vmem:[%s375 + $0x4] sm:$0xf]
    %v378 = vld [vmem:[%s375 + $0x8] sm:$0xf]
    %v379 = vld [vmem:[%s375 + $0xc] sm:$0xf]
    %v380 = vsel %vm158, %v365, 0
    %v383 = vsel %vm161, %v376, 0
    %385 = vmatpush.bf16.msra.mxu0 0
    %386 = vmatpush.bf16.msra.mxu0 0
    %387 = vmatpush.bf16.msra.mxu0 0
    %388 = vmatpush.bf16.msra.mxu0 0
    %389 = vmatpush.bf16.msra.mxu0 0
    %390 = vmatpush.bf16.msra.mxu0 0
    %391 = vmatpush.bf16.msra.mxu0 0
    %392 = vmatpush.bf16.msra.mxu0 %v383
    %393 = vmatmul.bf16.gmra.mxu0 %v380
    %v394 = vpop.f32.mrf.mxu0
    %v395 = vadd.f32 0.0, %v394
    %v396 = vpop.f32.mrf.mxu0
    %397 = vdwg.mxu0
    %v398 = vsel %vm158, %v368, 0
    %v401 = vsel %vm161, %v377, 0
    %403 = vmatpush.bf16.msra.mxu0 0
    %404 = vmatpush.bf16.msra.mxu0 0
    %405 = vmatpush.bf16.msra.mxu0 0
    %406 = vmatpush.bf16.msra.mxu0 0
    %407 = vmatpush.bf16.msra.mxu0 0
    %408 = vmatpush.bf16.msra.mxu0 0
    %409 = vmatpush.bf16.msra.mxu0 0
    %410 = vmatpush.bf16.msra.mxu0 %v401
    %411 = vmatmul.bf16.gmra.mxu0 %v398
    %v412 = vpop.f32.mrf.mxu0
    %v413 = vadd.f32 0.0, %v412
    %v414 = vpop.f32.mrf.mxu0
    %415 = vdwg.mxu0
    %v416 = vsel %vm158, %v371, 0
    %v419 = vsel %vm161, %v378, 0
    %421 = vmatpush.bf16.msra.mxu0 0
    %422 = vmatpush.bf16.msra.mxu0 0
    %423 = vmatpush.bf16.msra.mxu0 0
    %424 = vmatpush.bf16.msra.mxu0 0
    %425 = vmatpush.bf16.msra.mxu0 0
    %426 = vmatpush.bf16.msra.mxu0 0
    %427 = vmatpush.bf16.msra.mxu0 0
    %428 = vmatpush.bf16.msra.mxu0 %v419
    %429 = vmatmul.bf16.gmra.mxu0 %v416
    %v430 = vpop.f32.mrf.mxu0
    %v431 = vadd.f32 0.0, %v430
    %v432 = vpop.f32.mrf.mxu0
    %433 = vdwg.mxu0
    %v434 = vsel %vm158, %v374, 0
    %v437 = vsel %vm161, %v379, 0
    %439 = vmatpush.bf16.msra.mxu0 0
    %440 = vmatpush.bf16.msra.mxu0 0
    %441 = vmatpush.bf16.msra.mxu0 0
    %442 = vmatpush.bf16.msra.mxu0 0
    %443 = vmatpush.bf16.msra.mxu0 0
    %444 = vmatpush.bf16.msra.mxu0 0
    %445 = vmatpush.bf16.msra.mxu0 0
    %446 = vmatpush.bf16.msra.mxu0 %v437
    %447 = vmatmul.bf16.gmra.mxu0 %v434
    %v448 = vpop.f32.mrf.mxu0
    %v449 = vadd.f32 0.0, %v448
    %v450 = vpop.f32.mrf.mxu0
    %451 = vdwg.mxu0
    %v452 = vpack.c.bf16 %v395, %v395
    %v453 = vpack.c.bf16 %v413, %v413
    %v454 = vpack.c.bf16 %v431, %v431
    %v455 = vpack.c.bf16 %v449, %v449
    %460 = vrot.lane.b32.xlu0 %v452, 124
    %v461 = vpop.permute.xlu0 %460
    %462 = vrot.lane.b32.xlu0 %v453, 124
    %v463 = vpop.permute.xlu0 %462
    %464 = vrot.lane.b32.xlu0 %v454, 124
    %v465 = vpop.permute.xlu0 %464
    %466 = vrot.lane.b32.xlu0 %v455, 124
    %v467 = vpop.permute.xlu0 %466
    %v472 = vrot.slane %v461, 4
    %v473 = vsel %vm88, %v472, %v452
    %v475 = vunpack.c.l.s4 1983009808
    %v476 = vunpack.c.0.s8 %v475
    %v477 = vperm.slane %v473, %v476
    %v478 = vrot.slane %v465, 4
    %v479 = vsel %vm88, %v478, %v454
    %v481 = vunpack.c.l.s4 1983009808
    %v482 = vunpack.c.0.s8 %v481
    %v483 = vperm.slane %v479, %v482
    %v484 = vrot.slane %v483, 4
    %v485 = vsel %vm88, %v484, %v477
    %v487 = vunpack.c.l.s4 1934713408
    %v488 = vunpack.c.0.s8 %v487
    %v489 = vperm.slane %v485, %v488
    %v490 = vrot.slane %v463, 4
    %v491 = vsel %vm88, %v490, %v453
    %v493 = vunpack.c.l.s4 1983009808
    %v494 = vunpack.c.0.s8 %v493
    %v495 = vperm.slane %v491, %v494
    %v496 = vrot.slane %v467, 4
    %v497 = vsel %vm88, %v496, %v455
    %v499 = vunpack.c.l.s4 1983009808
    %v500 = vunpack.c.0.s8 %v499
    %v501 = vperm.slane %v497, %v500
    %v502 = vrot.slane %v501, 4
    %v503 = vsel %vm88, %v502, %v495
    %v505 = vunpack.c.l.s4 1934713408
    %v506 = vunpack.c.0.s8 %v505
    %v507 = vperm.slane %v503, %v506
    %v510 = vpack.i.b16 %v507, %v489
    %v511 = vshrl.u32 %v489, 16
    %v512 = vshrl.u32 %v507, 16
    %v513 = vpack.i.b16 %v512, %v511
    %v514 = vunpack.c.l.b16 %v513
    %v515 = vpack.c.b16 %v514, %v514
    %516 = vrot.lane.b32.xlu0 %v515, 4
    %v517 = vpop.permute.xlu0 %516
    %v520 = vsel %vm141, %v510, %v517
    %522 = vxpose.xlu0.c.b16.start [1/8] %v520, 128
    %523 = vxpose.xlu0.c.b16.cont [2/8] 0, 128
    %524 = vxpose.xlu0.c.b16.cont [3/8] 0, 128
    %525 = vxpose.xlu0.c.b16.cont [4/8] 0, 128
    %526 = vxpose.xlu0.c.b16.cont [5/8] 0, 128
    %527 = vxpose.xlu0.c.b16.cont [6/8] 0, 128
    %528 = vxpose.xlu0.c.b16.cont [7/8] 0, 128
    %529 = vxpose.xlu0.c.b16.end [8/8] 0, 128
    %v530 = vpop.trf.xlu0
    %v531 = vpop.trf.xlu0
    %v532 = vpop.trf.xlu0
    %v533 = vpop.trf.xlu0
    %v534 = vpop.trf.xlu0
    %v535 = vpop.trf.xlu0
    %v536 = vpop.trf.xlu0
    %v537 = vpop.trf.xlu0
    %v539 = vsel %vm158, %v530, 0
    %541 = vmatpush.bf16.msra.mxu0 0
    %542 = vmatpush.bf16.msra.mxu0 0
    %543 = vmatpush.bf16.msra.mxu0 0
    %544 = vmatpush.bf16.msra.mxu0 0
    %545 = vmatpush.bf16.msra.mxu0 0
    %546 = vmatpush.bf16.msra.mxu0 0
    %547 = vmatpush.bf16.msra.mxu0 0
    %548 = vmatpush.bf16.msra.mxu0 %v322
    %549 = vmatmul.bf16.gmra.mxu0 %v539
    %v550 = vpop.f32.mrf.mxu0
    %v551 = vadd.f32 0.0, %v550
    %v552 = vpop.f32.mrf.mxu0
    %553 = vdwg.mxu0
    %v555 = vrot.slane %v551, 4
    %s557 = scalar_lea.vmem [#allocation3], 4
    %558 = vst.msk [vmem:[%s557] sm:$0xf] %vm340, %v551
    %559 = vst.msk [vmem:[%s557 + $0x20] sm:$0xf] %vm340, %v555
    %560 = vrot.lane.b32.xlu0 %v351, 120
    %v561 = vpop.permute.xlu0 %560
    %562 = vrot.lane.b32.xlu0 %v352, 120
    %v563 = vpop.permute.xlu0 %562
    %564 = vrot.lane.b32.xlu0 %v353, 120
    %v565 = vpop.permute.xlu0 %564
    %566 = vrot.lane.b32.xlu0 %v354, 120
    %v567 = vpop.permute.xlu0 %566
    %568 = vrot.lane.b32.xlu0 %v129, 124
    %v569 = vpop.permute.xlu0 %568
    %570 = vrot.lane.b32.xlu0 %v130, 124
    %v571 = vpop.permute.xlu0 %570
    %572 = vrot.lane.b32.xlu0 %v131, 124
    %v573 = vpop.permute.xlu0 %572
    %574 = vrot.lane.b32.xlu0 %v132, 124
    %v575 = vpop.permute.xlu0 %574
    %v578 = vsel %vm141, %v561, %v569
    %v581 = vsel %vm141, %v563, %v571
    %v584 = vsel %vm141, %v565, %v573
    %v587 = vsel %vm141, %v567, %v575
    %s588 = scalar_lea.vmem %s2, 32
    %v589 = vld [vmem:[%s588] sm:$0xf]
    %v590 = vld [vmem:[%s588 + $0x4] sm:$0xf]
    %v591 = vld [vmem:[%s588 + $0x8] sm:$0xf]
    %v592 = vld [vmem:[%s588 + $0xc] sm:$0xf]
    %v593 = vsel %vm158, %v578, 0
    %v596 = vsel %vm161, %v589, 0
    %598 = vmatpush.bf16.msra.mxu0 0
    %599 = vmatpush.bf16.msra.mxu0 0
    %600 = vmatpush.bf16.msra.mxu0 0
    %601 = vmatpush.bf16.msra.mxu0 0
    %602 = vmatpush.bf16.msra.mxu0 0
    %603 = vmatpush.bf16.msra.mxu0 0
    %604 = vmatpush.bf16.msra.mxu0 0
    %605 = vmatpush.bf16.msra.mxu0 %v596
    %606 = vmatmul.bf16.gmra.mxu0 %v593
    %v607 = vpop.f32.mrf.mxu0
    %v608 = vadd.f32 0.0, %v607
    %v609 = vpop.f32.mrf.mxu0
    %610 = vdwg.mxu0
    %v611 = vsel %vm158, %v581, 0
    %v614 = vsel %vm161, %v590, 0
    %616 = vmatpush.bf16.msra.mxu0 0
    %617 = vmatpush.bf16.msra.mxu0 0
    %618 = vmatpush.bf16.msra.mxu0 0
    %619 = vmatpush.bf16.msra.mxu0 0
    %620 = vmatpush.bf16.msra.mxu0 0
    %621 = vmatpush.bf16.msra.mxu0 0
    %622 = vmatpush.bf16.msra.mxu0 0
    %623 = vmatpush.bf16.msra.mxu0 %v614
    %624 = vmatmul.bf16.gmra.mxu0 %v611
    %v625 = vpop.f32.mrf.mxu0
    %v626 = vadd.f32 0.0, %v625
    %v627 = vpop.f32.mrf.mxu0
    %628 = vdwg.mxu0
    %v629 = vsel %vm158, %v584, 0
    %v632 = vsel %vm161, %v591, 0
    %634 = vmatpush.bf16.msra.mxu0 0
    %635 = vmatpush.bf16.msra.mxu0 0
    %636 = vmatpush.bf16.msra.mxu0 0
    %637 = vmatpush.bf16.msra.mxu0 0
    %638 = vmatpush.bf16.msra.mxu0 0
    %639 = vmatpush.bf16.msra.mxu0 0
    %640 = vmatpush.bf16.msra.mxu0 0
    %641 = vmatpush.bf16.msra.mxu0 %v632
    %642 = vmatmul.bf16.gmra.mxu0 %v629
    %v643 = vpop.f32.mrf.mxu0
    %v644 = vadd.f32 0.0, %v643
    %v645 = vpop.f32.mrf.mxu0
    %646 = vdwg.mxu0
    %v647 = vsel %vm158, %v587, 0
    %v650 = vsel %vm161, %v592, 0
    %652 = vmatpush.bf16.msra.mxu0 0
    %653 = vmatpush.bf16.msra.mxu0 0
    %654 = vmatpush.bf16.msra.mxu0 0
    %655 = vmatpush.bf16.msra.mxu0 0
    %656 = vmatpush.bf16.msra.mxu0 0
    %657 = vmatpush.bf16.msra.mxu0 0
    %658 = vmatpush.bf16.msra.mxu0 0
    %659 = vmatpush.bf16.msra.mxu0 %v650
    %660 = vmatmul.bf16.gmra.mxu0 %v647
    %v661 = vpop.f32.mrf.mxu0
    %v662 = vadd.f32 0.0, %v661
    %v663 = vpop.f32.mrf.mxu0
    %664 = vdwg.mxu0
    %v665 = vpack.c.bf16 %v608, %v608
    %v666 = vpack.c.bf16 %v626, %v626
    %v667 = vpack.c.bf16 %v644, %v644
    %v668 = vpack.c.bf16 %v662, %v662
    %673 = vrot.lane.b32.xlu0 %v665, 124
    %v674 = vpop.permute.xlu0 %673
    %675 = vrot.lane.b32.xlu0 %v666, 124
    %v676 = vpop.permute.xlu0 %675
    %677 = vrot.lane.b32.xlu0 %v667, 124
    %v678 = vpop.permute.xlu0 %677
    %679 = vrot.lane.b32.xlu0 %v668, 124
    %v680 = vpop.permute.xlu0 %679
    %v685 = vrot.slane %v674, 4
    %v686 = vsel %vm88, %v685, %v665
    %v688 = vunpack.c.l.s4 1983009808
    %v689 = vunpack.c.0.s8 %v688
    %v690 = vperm.slane %v686, %v689
    %v691 = vrot.slane %v678, 4
    %v692 = vsel %vm88, %v691, %v667
    %v694 = vunpack.c.l.s4 1983009808
    %v695 = vunpack.c.0.s8 %v694
    %v696 = vperm.slane %v692, %v695
    %v697 = vrot.slane %v696, 4
    %v698 = vsel %vm88, %v697, %v690
    %v700 = vunpack.c.l.s4 1934713408
    %v701 = vunpack.c.0.s8 %v700
    %v702 = vperm.slane %v698, %v701
    %v703 = vrot.slane %v676, 4
    %v704 = vsel %vm88, %v703, %v666
    %v706 = vunpack.c.l.s4 1983009808
    %v707 = vunpack.c.0.s8 %v706
    %v708 = vperm.slane %v704, %v707
    %v709 = vrot.slane %v680, 4
    %v710 = vsel %vm88, %v709, %v668
    %v712 = vunpack.c.l.s4 1983009808
    %v713 = vunpack.c.0.s8 %v712
    %v714 = vperm.slane %v710, %v713
    %v715 = vrot.slane %v714, 4
    %v716 = vsel %vm88, %v715, %v708
    %v718 = vunpack.c.l.s4 1934713408
    %v719 = vunpack.c.0.s8 %v718
    %v720 = vperm.slane %v716, %v719
    %v723 = vpack.i.b16 %v720, %v702
    %v724 = vshrl.u32 %v702, 16
    %v725 = vshrl.u32 %v720, 16
    %v726 = vpack.i.b16 %v725, %v724
    %v727 = vunpack.c.l.b16 %v726
    %v728 = vpack.c.b16 %v727, %v727
    %729 = vrot.lane.b32.xlu0 %v728, 4
    %v730 = vpop.permute.xlu0 %729
    %v733 = vsel %vm141, %v723, %v730
    %735 = vxpose.xlu0.c.b16.start [1/8] %v733, 128
    %736 = vxpose.xlu0.c.b16.cont [2/8] 0, 128
    %737 = vxpose.xlu0.c.b16.cont [3/8] 0, 128
    %738 = vxpose.xlu0.c.b16.cont [4/8] 0, 128
    %739 = vxpose.xlu0.c.b16.cont [5/8] 0, 128
    %740 = vxpose.xlu0.c.b16.cont [6/8] 0, 128
    %741 = vxpose.xlu0.c.b16.cont [7/8] 0, 128
    %742 = vxpose.xlu0.c.b16.end [8/8] 0, 128
    %v743 = vpop.trf.xlu0
    %v744 = vpop.trf.xlu0
    %v745 = vpop.trf.xlu0
    %v746 = vpop.trf.xlu0
    %v747 = vpop.trf.xlu0
    %v748 = vpop.trf.xlu0
    %v749 = vpop.trf.xlu0
    %v750 = vpop.trf.xlu0
    %v752 = vsel %vm158, %v743, 0
    %754 = vmatpush.bf16.msra.mxu0 0
    %755 = vmatpush.bf16.msra.mxu0 0
    %756 = vmatpush.bf16.msra.mxu0 0
    %757 = vmatpush.bf16.msra.mxu0 0
    %758 = vmatpush.bf16.msra.mxu0 0
    %759 = vmatpush.bf16.msra.mxu0 0
    %760 = vmatpush.bf16.msra.mxu0 0
    %761 = vmatpush.bf16.msra.mxu0 %v322
    %762 = vmatmul.bf16.gmra.mxu0 %v752
    %v763 = vpop.f32.mrf.mxu0
    %v764 = vadd.f32 0.0, %v763
    %v765 = vpop.f32.mrf.mxu0
    %766 = vdwg.mxu0
    %v768 = vrot.slane %v764, 4
    %s770 = scalar_lea.vmem [#allocation3], 8
    %771 = vst.msk [vmem:[%s770] sm:$0xf] %vm340, %v764
    %772 = vst.msk [vmem:[%s770 + $0x20] sm:$0xf] %vm340, %v768
    %773 = vrot.lane.b32.xlu0 %v351, 116
    %v774 = vpop.permute.xlu0 %773
    %775 = vrot.lane.b32.xlu0 %v352, 116
    %v776 = vpop.permute.xlu0 %775
    %777 = vrot.lane.b32.xlu0 %v353, 116
    %v778 = vpop.permute.xlu0 %777
    %779 = vrot.lane.b32.xlu0 %v354, 116
    %v780 = vpop.permute.xlu0 %779
    %781 = vrot.lane.b32.xlu0 %v129, 120
    %v782 = vpop.permute.xlu0 %781
    %783 = vrot.lane.b32.xlu0 %v130, 120
    %v784 = vpop.permute.xlu0 %783
    %785 = vrot.lane.b32.xlu0 %v131, 120
    %v786 = vpop.permute.xlu0 %785
    %787 = vrot.lane.b32.xlu0 %v132, 120
    %v788 = vpop.permute.xlu0 %787
    %v791 = vsel %vm141, %v774, %v782
    %v794 = vsel %vm141, %v776, %v784
    %v797 = vsel %vm141, %v778, %v786
    %v800 = vsel %vm141, %v780, %v788
    %s801 = scalar_lea.vmem %s2, 48
    %v802 = vld [vmem:[%s801] sm:$0xf]
    %v803 = vld [vmem:[%s801 + $0x4] sm:$0xf]
    %v804 = vld [vmem:[%s801 + $0x8] sm:$0xf]
    %v805 = vld [vmem:[%s801 + $0xc] sm:$0xf]
    %v806 = vsel %vm158, %v791, 0
    %v809 = vsel %vm161, %v802, 0
    %811 = vmatpush.bf16.msra.mxu0 0
    %812 = vmatpush.bf16.msra.mxu0 0
    %813 = vmatpush.bf16.msra.mxu0 0
    %814 = vmatpush.bf16.msra.mxu0 0
    %815 = vmatpush.bf16.msra.mxu0 0
    %816 = vmatpush.bf16.msra.mxu0 0
    %817 = vmatpush.bf16.msra.mxu0 0
    %818 = vmatpush.bf16.msra.mxu0 %v809
    %819 = vmatmul.bf16.gmra.mxu0 %v806
    %v820 = vpop.f32.mrf.mxu0
    %v821 = vadd.f32 0.0, %v820
    %v822 = vpop.f32.mrf.mxu0
    %823 = vdwg.mxu0
    %v824 = vsel %vm158, %v794, 0
    %v827 = vsel %vm161, %v803, 0
    %829 = vmatpush.bf16.msra.mxu0 0
    %830 = vmatpush.bf16.msra.mxu0 0
    %831 = vmatpush.bf16.msra.mxu0 0
    %832 = vmatpush.bf16.msra.mxu0 0
    %833 = vmatpush.bf16.msra.mxu0 0
    %834 = vmatpush.bf16.msra.mxu0 0
    %835 = vmatpush.bf16.msra.mxu0 0
    %836 = vmatpush.bf16.msra.mxu0 %v827
    %837 = vmatmul.bf16.gmra.mxu0 %v824
    %v838 = vpop.f32.mrf.mxu0
    %v839 = vadd.f32 0.0, %v838
    %v840 = vpop.f32.mrf.mxu0
    %841 = vdwg.mxu0
    %v842 = vsel %vm158, %v797, 0
    %v845 = vsel %vm161, %v804, 0
    %847 = vmatpush.bf16.msra.mxu0 0
    %848 = vmatpush.bf16.msra.mxu0 0
    %849 = vmatpush.bf16.msra.mxu0 0
    %850 = vmatpush.bf16.msra.mxu0 0
    %851 = vmatpush.bf16.msra.mxu0 0
    %852 = vmatpush.bf16.msra.mxu0 0
    %853 = vmatpush.bf16.msra.mxu0 0
    %854 = vmatpush.bf16.msra.mxu0 %v845
    %855 = vmatmul.bf16.gmra.mxu0 %v842
    %v856 = vpop.f32.mrf.mxu0
    %v857 = vadd.f32 0.0, %v856
    %v858 = vpop.f32.mrf.mxu0
    %859 = vdwg.mxu0
    %v860 = vsel %vm158, %v800, 0
    %v863 = vsel %vm161, %v805, 0
    %865 = vmatpush.bf16.msra.mxu0 0
    %866 = vmatpush.bf16.msra.mxu0 0
    %867 = vmatpush.bf16.msra.mxu0 0
    %868 = vmatpush.bf16.msra.mxu0 0
    %869 = vmatpush.bf16.msra.mxu0 0
    %870 = vmatpush.bf16.msra.mxu0 0
    %871 = vmatpush.bf16.msra.mxu0 0
    %872 = vmatpush.bf16.msra.mxu0 %v863
    %873 = vmatmul.bf16.gmra.mxu0 %v860
    %v874 = vpop.f32.mrf.mxu0
    %v875 = vadd.f32 0.0, %v874
    %v876 = vpop.f32.mrf.mxu0
    %877 = vdwg.mxu0
    %v878 = vpack.c.bf16 %v821, %v821
    %v879 = vpack.c.bf16 %v839, %v839
    %v880 = vpack.c.bf16 %v857, %v857
    %v881 = vpack.c.bf16 %v875, %v875
    %886 = vrot.lane.b32.xlu0 %v878, 124
    %v887 = vpop.permute.xlu0 %886
    %888 = vrot.lane.b32.xlu0 %v879, 124
    %v889 = vpop.permute.xlu0 %888
    %890 = vrot.lane.b32.xlu0 %v880, 124
    %v891 = vpop.permute.xlu0 %890
    %892 = vrot.lane.b32.xlu0 %v881, 124
    %v893 = vpop.permute.xlu0 %892
    %v898 = vrot.slane %v887, 4
    %v899 = vsel %vm88, %v898, %v878
    %v901 = vunpack.c.l.s4 1983009808
    %v902 = vunpack.c.0.s8 %v901
    %v903 = vperm.slane %v899, %v902
    %v904 = vrot.slane %v891, 4
    %v905 = vsel %vm88, %v904, %v880
    %v907 = vunpack.c.l.s4 1983009808
    %v908 = vunpack.c.0.s8 %v907
    %v909 = vperm.slane %v905, %v908
    %v910 = vrot.slane %v909, 4
    %v911 = vsel %vm88, %v910, %v903
    %v913 = vunpack.c.l.s4 1934713408
    %v914 = vunpack.c.0.s8 %v913
    %v915 = vperm.slane %v911, %v914
    %v916 = vrot.slane %v889, 4
    %v917 = vsel %vm88, %v916, %v879
    %v919 = vunpack.c.l.s4 1983009808
    %v920 = vunpack.c.0.s8 %v919
    %v921 = vperm.slane %v917, %v920
    %v922 = vrot.slane %v893, 4
    %v923 = vsel %vm88, %v922, %v881
    %v925 = vunpack.c.l.s4 1983009808
    %v926 = vunpack.c.0.s8 %v925
    %v927 = vperm.slane %v923, %v926
    %v928 = vrot.slane %v927, 4
    %v929 = vsel %vm88, %v928, %v921
    %v931 = vunpack.c.l.s4 1934713408
    %v932 = vunpack.c.0.s8 %v931
    %v933 = vperm.slane %v929, %v932
    %v936 = vpack.i.b16 %v933, %v915
    %v937 = vshrl.u32 %v915, 16
    %v938 = vshrl.u32 %v933, 16
    %v939 = vpack.i.b16 %v938, %v937
    %v940 = vunpack.c.l.b16 %v939
    %v941 = vpack.c.b16 %v940, %v940
    %942 = vrot.lane.b32.xlu0 %v941, 4
    %v943 = vpop.permute.xlu0 %942
    %v946 = vsel %vm141, %v936, %v943
    %948 = vxpose.xlu0.c.b16.start [1/8] %v946, 128
    %949 = vxpose.xlu0.c.b16.cont [2/8] 0, 128
    %950 = vxpose.xlu0.c.b16.cont [3/8] 0, 128
    %951 = vxpose.xlu0.c.b16.cont [4/8] 0, 128
    %952 = vxpose.xlu0.c.b16.cont [5/8] 0, 128
    %953 = vxpose.xlu0.c.b16.cont [6/8] 0, 128
    %954 = vxpose.xlu0.c.b16.cont [7/8] 0, 128
    %955 = vxpose.xlu0.c.b16.end [8/8] 0, 128
    %v956 = vpop.trf.xlu0
    %v957 = vpop.trf.xlu0
    %v958 = vpop.trf.xlu0
    %v959 = vpop.trf.xlu0
    %v960 = vpop.trf.xlu0
    %v961 = vpop.trf.xlu0
    %v962 = vpop.trf.xlu0
    %v963 = vpop.trf.xlu0
    %v965 = vsel %vm158, %v956, 0
    %967 = vmatpush.bf16.msra.mxu0 0
    %968 = vmatpush.bf16.msra.mxu0 0
    %969 = vmatpush.bf16.msra.mxu0 0
    %970 = vmatpush.bf16.msra.mxu0 0
    %971 = vmatpush.bf16.msra.mxu0 0
    %972 = vmatpush.bf16.msra.mxu0 0
    %973 = vmatpush.bf16.msra.mxu0 0
    %974 = vmatpush.bf16.msra.mxu0 %v322
    %975 = vmatmul.bf16.gmra.mxu0 %v965
    %v976 = vpop.f32.mrf.mxu0
    %v977 = vadd.f32 0.0, %v976
    %v978 = vpop.f32.mrf.mxu0
    %979 = vdwg.mxu0
    %v981 = vrot.slane %v977, 4
    %s983 = scalar_lea.vmem [#allocation3], 12
    %984 = vst.msk [vmem:[%s983] sm:$0xf] %vm340, %v977
    %985 = vst.msk [vmem:[%s983 + $0x20] sm:$0xf] %vm340, %v981
    %986 = vrot.lane.b32.xlu0 %v351, 112
    %v987 = vpop.permute.xlu0 %986
    %988 = vrot.lane.b32.xlu0 %v352, 112
    %v989 = vpop.permute.xlu0 %988
    %990 = vrot.lane.b32.xlu0 %v353, 112
    %v991 = vpop.permute.xlu0 %990
    %992 = vrot.lane.b32.xlu0 %v354, 112
    %v993 = vpop.permute.xlu0 %992
    %994 = vrot.lane.b32.xlu0 %v129, 116
    %v995 = vpop.permute.xlu0 %994
    %996 = vrot.lane.b32.xlu0 %v130, 116
    %v997 = vpop.permute.xlu0 %996
    %998 = vrot.lane.b32.xlu0 %v131, 116
    %v999 = vpop.permute.xlu0 %998
    %1000 = vrot.lane.b32.xlu0 %v132, 116
    %v1001 = vpop.permute.xlu0 %1000
    %v1004 = vsel %vm141, %v987, %v995
    %v1007 = vsel %vm141, %v989, %v997
    %v1010 = vsel %vm141, %v991, %v999
    %v1013 = vsel %vm141, %v993, %v1001
    %s1014 = scalar_lea.vmem %s2, 64
    %v1015 = vld [vmem:[%s1014] sm:$0xf]
    %v1016 = vld [vmem:[%s1014 + $0x4] sm:$0xf]
    %v1017 = vld [vmem:[%s1014 + $0x8] sm:$0xf]
    %v1018 = vld [vmem:[%s1014 + $0xc] sm:$0xf]
    %v1019 = vsel %vm158, %v1004, 0
    %v1022 = vsel %vm161, %v1015, 0
    %1024 = vmatpush.bf16.msra.mxu0 0
    %1025 = vmatpush.bf16.msra.mxu0 0
    %1026 = vmatpush.bf16.msra.mxu0 0
    %1027 = vmatpush.bf16.msra.mxu0 0
    %1028 = vmatpush.bf16.msra.mxu0 0
    %1029 = vmatpush.bf16.msra.mxu0 0
    %1030 = vmatpush.bf16.msra.mxu0 0
    %1031 = vmatpush.bf16.msra.mxu0 %v1022
    %1032 = vmatmul.bf16.gmra.mxu0 %v1019
    %v1033 = vpop.f32.mrf.mxu0
    %v1034 = vadd.f32 0.0, %v1033
    %v1035 = vpop.f32.mrf.mxu0
    %1036 = vdwg.mxu0
    %v1037 = vsel %vm158, %v1007, 0
    %v1040 = vsel %vm161, %v1016, 0
    %1042 = vmatpush.bf16.msra.mxu0 0
    %1043 = vmatpush.bf16.msra.mxu0 0
    %1044 = vmatpush.bf16.msra.mxu0 0
    %1045 = vmatpush.bf16.msra.mxu0 0
    %1046 = vmatpush.bf16.msra.mxu0 0
    %1047 = vmatpush.bf16.msra.mxu0 0
    %1048 = vmatpush.bf16.msra.mxu0 0
    %1049 = vmatpush.bf16.msra.mxu0 %v1040
    %1050 = vmatmul.bf16.gmra.mxu0 %v1037
    %v1051 = vpop.f32.mrf.mxu0
    %v1052 = vadd.f32 0.0, %v1051
    %v1053 = vpop.f32.mrf.mxu0
    %1054 = vdwg.mxu0
    %v1055 = vsel %vm158, %v1010, 0
    %v1058 = vsel %vm161, %v1017, 0
    %1060 = vmatpush.bf16.msra.mxu0 0
    %1061 = vmatpush.bf16.msra.mxu0 0
    %1062 = vmatpush.bf16.msra.mxu0 0
    %1063 = vmatpush.bf16.msra.mxu0 0
    %1064 = vmatpush.bf16.msra.mxu0 0
    %1065 = vmatpush.bf16.msra.mxu0 0
    %1066 = vmatpush.bf16.msra.mxu0 0
    %1067 = vmatpush.bf16.msra.mxu0 %v1058
    %1068 = vmatmul.bf16.gmra.mxu0 %v1055
    %v1069 = vpop.f32.mrf.mxu0
    %v1070 = vadd.f32 0.0, %v1069
    %v1071 = vpop.f32.mrf.mxu0
    %1072 = vdwg.mxu0
    %v1073 = vsel %vm158, %v1013, 0
    %v1076 = vsel %vm161, %v1018, 0
    %1078 = vmatpush.bf16.msra.mxu0 0
    %1079 = vmatpush.bf16.msra.mxu0 0
    %1080 = vmatpush.bf16.msra.mxu0 0
    %1081 = vmatpush.bf16.msra.mxu0 0
    %1082 = vmatpush.bf16.msra.mxu0 0
    %1083 = vmatpush.bf16.msra.mxu0 0
    %1084 = vmatpush.bf16.msra.mxu0 0
    %1085 = vmatpush.bf16.msra.mxu0 %v1076
    %1086 = vmatmul.bf16.gmra.mxu0 %v1073
    %v1087 = vpop.f32.mrf.mxu0
    %v1088 = vadd.f32 0.0, %v1087
    %v1089 = vpop.f32.mrf.mxu0
    %1090 = vdwg.mxu0
    %v1091 = vpack.c.bf16 %v1034, %v1034
    %v1092 = vpack.c.bf16 %v1052, %v1052
    %v1093 = vpack.c.bf16 %v1070, %v1070
    %v1094 = vpack.c.bf16 %v1088, %v1088
    %1099 = vrot.lane.b32.xlu0 %v1091, 124
    %v1100 = vpop.permute.xlu0 %1099
    %1101 = vrot.lane.b32.xlu0 %v1092, 124
    %v1102 = vpop.permute.xlu0 %1101
    %1103 = vrot.lane.b32.xlu0 %v1093, 124
    %v1104 = vpop.permute.xlu0 %1103
    %1105 = vrot.lane.b32.xlu0 %v1094, 124
    %v1106 = vpop.permute.xlu0 %1105
    %v1111 = vrot.slane %v1100, 4
    %v1112 = vsel %vm88, %v1111, %v1091
    %v1114 = vunpack.c.l.s4 1983009808
    %v1115 = vunpack.c.0.s8 %v1114
    %v1116 = vperm.slane %v1112, %v1115
    %v1117 = vrot.slane %v1104, 4
    %v1118 = vsel %vm88, %v1117, %v1093
    %v1120 = vunpack.c.l.s4 1983009808
    %v1121 = vunpack.c.0.s8 %v1120
    %v1122 = vperm.slane %v1118, %v1121
    %v1123 = vrot.slane %v1122, 4
    %v1124 = vsel %vm88, %v1123, %v1116
    %v1126 = vunpack.c.l.s4 1934713408
    %v1127 = vunpack.c.0.s8 %v1126
    %v1128 = vperm.slane %v1124, %v1127
    %v1129 = vrot.slane %v1102, 4
    %v1130 = vsel %vm88, %v1129, %v1092
    %v1132 = vunpack.c.l.s4 1983009808
    %v1133 = vunpack.c.0.s8 %v1132
    %v1134 = vperm.slane %v1130, %v1133
    %v1135 = vrot.slane %v1106, 4
    %v1136 = vsel %vm88, %v1135, %v1094
    %v1138 = vunpack.c.l.s4 1983009808
    %v1139 = vunpack.c.0.s8 %v1138
    %v1140 = vperm.slane %v1136, %v1139
    %v1141 = vrot.slane %v1140, 4
    %v1142 = vsel %vm88, %v1141, %v1134
    %v1144 = vunpack.c.l.s4 1934713408
    %v1145 = vunpack.c.0.s8 %v1144
    %v1146 = vperm.slane %v1142, %v1145
    %v1149 = vpack.i.b16 %v1146, %v1128
    %v1150 = vshrl.u32 %v1128, 16
    %v1151 = vshrl.u32 %v1146, 16
    %v1152 = vpack.i.b16 %v1151, %v1150
    %v1153 = vunpack.c.l.b16 %v1152
    %v1154 = vpack.c.b16 %v1153, %v1153
    %1155 = vrot.lane.b32.xlu0 %v1154, 4
    %v1156 = vpop.permute.xlu0 %1155
    %v1159 = vsel %vm141, %v1149, %v1156
    %1161 = vxpose.xlu0.c.b16.start [1/8] %v1159, 128
    %1162 = vxpose.xlu0.c.b16.cont [2/8] 0, 128
    %1163 = vxpose.xlu0.c.b16.cont [3/8] 0, 128
    %1164 = vxpose.xlu0.c.b16.cont [4/8] 0, 128
    %1165 = vxpose.xlu0.c.b16.cont [5/8] 0, 128
    %1166 = vxpose.xlu0.c.b16.cont [6/8] 0, 128
    %1167 = vxpose.xlu0.c.b16.cont [7/8] 0, 128
    %1168 = vxpose.xlu0.c.b16.end [8/8] 0, 128
    %v1169 = vpop.trf.xlu0
    %v1170 = vpop.trf.xlu0
    %v1171 = vpop.trf.xlu0
    %v1172 = vpop.trf.xlu0
    %v1173 = vpop.trf.xlu0
    %v1174 = vpop.trf.xlu0
    %v1175 = vpop.trf.xlu0
    %v1176 = vpop.trf.xlu0
    %v1178 = vsel %vm158, %v1169, 0
    %1180 = vmatpush.bf16.msra.mxu0 0
    %1181 = vmatpush.bf16.msra.mxu0 0
    %1182 = vmatpush.bf16.msra.mxu0 0
    %1183 = vmatpush.bf16.msra.mxu0 0
    %1184 = vmatpush.bf16.msra.mxu0 0
    %1185 = vmatpush.bf16.msra.mxu0 0
    %1186 = vmatpush.bf16.msra.mxu0 0
    %1187 = vmatpush.bf16.msra.mxu0 %v322
    %1188 = vmatmul.bf16.gmra.mxu0 %v1178
    %v1189 = vpop.f32.mrf.mxu0
    %v1190 = vadd.f32 0.0, %v1189
    %v1191 = vpop.f32.mrf.mxu0
    %1192 = vdwg.mxu0
    %v1194 = vrot.slane %v1190, 4
    %s1196 = scalar_lea.vmem [#allocation3], 16
    %1197 = vst.msk [vmem:[%s1196] sm:$0xf] %vm340, %v1190
    %1198 = vst.msk [vmem:[%s1196 + $0x20] sm:$0xf] %vm340, %v1194
    %1199 = vrot.lane.b32.xlu0 %v351, 108
    %v1200 = vpop.permute.xlu0 %1199
    %1201 = vrot.lane.b32.xlu0 %v352, 108
    %v1202 = vpop.permute.xlu0 %1201
    %1203 = vrot.lane.b32.xlu0 %v353, 108
    %v1204 = vpop.permute.xlu0 %1203
    %1205 = vrot.lane.b32.xlu0 %v354, 108
    %v1206 = vpop.permute.xlu0 %1205
    %1207 = vrot.lane.b32.xlu0 %v129, 112
    %v1208 = vpop.permute.xlu0 %1207
    %1209 = vrot.lane.b32.xlu0 %v130, 112
    %v1210 = vpop.permute.xlu0 %1209
    %1211 = vrot.lane.b32.xlu0 %v131, 112
    %v1212 = vpop.permute.xlu0 %1211
    %1213 = vrot.lane.b32.xlu0 %v132, 112
    %v1214 = vpop.permute.xlu0 %1213
    %v1217 = vsel %vm141, %v1200, %v1208
    %v1220 = vsel %vm141, %v1202, %v1210
    %v1223 = vsel %vm141, %v1204, %v1212
    %v1226 = vsel %vm141, %v1206, %v1214
    %s1227 = scalar_lea.vmem %s2, 80
    %v1228 = vld [vmem:[%s1227] sm:$0xf]
    %v1229 = vld [vmem:[%s1227 + $0x4] sm:$0xf]
    %v1230 = vld [vmem:[%s1227 + $0x8] sm:$0xf]
    %v1231 = vld [vmem:[%s1227 + $0xc] sm:$0xf]
    %v1232 = vsel %vm158, %v1217, 0
    %v1235 = vsel %vm161, %v1228, 0
    %1237 = vmatpush.bf16.msra.mxu0 0
    %1238 = vmatpush.bf16.msra.mxu0 0
    %1239 = vmatpush.bf16.msra.mxu0 0
    %1240 = vmatpush.bf16.msra.mxu0 0
    %1241 = vmatpush.bf16.msra.mxu0 0
    %1242 = vmatpush.bf16.msra.mxu0 0
    %1243 = vmatpush.bf16.msra.mxu0 0
    %1244 = vmatpush.bf16.msra.mxu0 %v1235
    %1245 = vmatmul.bf16.gmra.mxu0 %v1232
    %v1246 = vpop.f32.mrf.mxu0
    %v1247 = vadd.f32 0.0, %v1246
    %v1248 = vpop.f32.mrf.mxu0
    %1249 = vdwg.mxu0
    %v1250 = vsel %vm158, %v1220, 0
    %v1253 = vsel %vm161, %v1229, 0
    %1255 = vmatpush.bf16.msra.mxu0 0
    %1256 = vmatpush.bf16.msra.mxu0 0
    %1257 = vmatpush.bf16.msra.mxu0 0
    %1258 = vmatpush.bf16.msra.mxu0 0
    %1259 = vmatpush.bf16.msra.mxu0 0
    %1260 = vmatpush.bf16.msra.mxu0 0
    %1261 = vmatpush.bf16.msra.mxu0 0
    %1262 = vmatpush.bf16.msra.mxu0 %v1253
    %1263 = vmatmul.bf16.gmra.mxu0 %v1250
    %v1264 = vpop.f32.mrf.mxu0
    %v1265 = vadd.f32 0.0, %v1264
    %v1266 = vpop.f32.mrf.mxu0
    %1267 = vdwg.mxu0
    %v1268 = vsel %vm158, %v1223, 0
    %v1271 = vsel %vm161, %v1230, 0
    %1273 = vmatpush.bf16.msra.mxu0 0
    %1274 = vmatpush.bf16.msra.mxu0 0
    %1275 = vmatpush.bf16.msra.mxu0 0
    %1276 = vmatpush.bf16.msra.mxu0 0
    %1277 = vmatpush.bf16.msra.mxu0 0
    %1278 = vmatpush.bf16.msra.mxu0 0
    %1279 = vmatpush.bf16.msra.mxu0 0
    %1280 = vmatpush.bf16.msra.mxu0 %v1271
    %1281 = vmatmul.bf16.gmra.mxu0 %v1268
    %v1282 = vpop.f32.mrf.mxu0
    %v1283 = vadd.f32 0.0, %v1282
    %v1284 = vpop.f32.mrf.mxu0
    %1285 = vdwg.mxu0
    %v1286 = vsel %vm158, %v1226, 0
    %v1289 = vsel %vm161, %v1231, 0
    %1291 = vmatpush.bf16.msra.mxu0 0
    %1292 = vmatpush.bf16.msra.mxu0 0
    %1293 = vmatpush.bf16.msra.mxu0 0
    %1294 = vmatpush.bf16.msra.mxu0 0
    %1295 = vmatpush.bf16.msra.mxu0 0
    %1296 = vmatpush.bf16.msra.mxu0 0
    %1297 = vmatpush.bf16.msra.mxu0 0
    %1298 = vmatpush.bf16.msra.mxu0 %v1289
    %1299 = vmatmul.bf16.gmra.mxu0 %v1286
    %v1300 = vpop.f32.mrf.mxu0
    %v1301 = vadd.f32 0.0, %v1300
    %v1302 = vpop.f32.mrf.mxu0
    %1303 = vdwg.mxu0
    %v1304 = vpack.c.bf16 %v1247, %v1247
    %v1305 = vpack.c.bf16 %v1265, %v1265
    %v1306 = vpack.c.bf16 %v1283, %v1283
    %v1307 = vpack.c.bf16 %v1301, %v1301
    %1312 = vrot.lane.b32.xlu0 %v1304, 124
    %v1313 = vpop.permute.xlu0 %1312
    %1314 = vrot.lane.b32.xlu0 %v1305, 124
    %v1315 = vpop.permute.xlu0 %1314
    %1316 = vrot.lane.b32.xlu0 %v1306, 124
    %v1317 = vpop.permute.xlu0 %1316
    %1318 = vrot.lane.b32.xlu0 %v1307, 124
    %v1319 = vpop.permute.xlu0 %1318
    %v1324 = vrot.slane %v1313, 4
    %v1325 = vsel %vm88, %v1324, %v1304
    %v1327 = vunpack.c.l.s4 1983009808
    %v1328 = vunpack.c.0.s8 %v1327
    %v1329 = vperm.slane %v1325, %v1328
    %v1330 = vrot.slane %v1317, 4
    %v1331 = vsel %vm88, %v1330, %v1306
    %v1333 = vunpack.c.l.s4 1983009808
    %v1334 = vunpack.c.0.s8 %v1333
    %v1335 = vperm.slane %v1331, %v1334
    %v1336 = vrot.slane %v1335, 4
    %v1337 = vsel %vm88, %v1336, %v1329
    %v1339 = vunpack.c.l.s4 1934713408
    %v1340 = vunpack.c.0.s8 %v1339
    %v1341 = vperm.slane %v1337, %v1340
    %v1342 = vrot.slane %v1315, 4
    %v1343 = vsel %vm88, %v1342, %v1305
    %v1345 = vunpack.c.l.s4 1983009808
    %v1346 = vunpack.c.0.s8 %v1345
    %v1347 = vperm.slane %v1343, %v1346
    %v1348 = vrot.slane %v1319, 4
    %v1349 = vsel %vm88, %v1348, %v1307
    %v1351 = vunpack.c.l.s4 1983009808
    %v1352 = vunpack.c.0.s8 %v1351
    %v1353 = vperm.slane %v1349, %v1352
    %v1354 = vrot.slane %v1353, 4
    %v1355 = vsel %vm88, %v1354, %v1347
    %v1357 = vunpack.c.l.s4 1934713408
    %v1358 = vunpack.c.0.s8 %v1357
    %v1359 = vperm.slane %v1355, %v1358
    %v1362 = vpack.i.b16 %v1359, %v1341
    %v1363 = vshrl.u32 %v1341, 16
    %v1364 = vshrl.u32 %v1359, 16
    %v1365 = vpack.i.b16 %v1364, %v1363
    %v1366 = vunpack.c.l.b16 %v1365
    %v1367 = vpack.c.b16 %v1366, %v1366
    %1368 = vrot.lane.b32.xlu0 %v1367, 4
    %v1369 = vpop.permute.xlu0 %1368
    %v1372 = vsel %vm141, %v1362, %v1369
    %1374 = vxpose.xlu0.c.b16.start [1/8] %v1372, 128
    %1375 = vxpose.xlu0.c.b16.cont [2/8] 0, 128
    %1376 = vxpose.xlu0.c.b16.cont [3/8] 0, 128
    %1377 = vxpose.xlu0.c.b16.cont [4/8] 0, 128
    %1378 = vxpose.xlu0.c.b16.cont [5/8] 0, 128
    %1379 = vxpose.xlu0.c.b16.cont [6/8] 0, 128
    %1380 = vxpose.xlu0.c.b16.cont [7/8] 0, 128
    %1381 = vxpose.xlu0.c.b16.end [8/8] 0, 128
    %v1382 = vpop.trf.xlu0
    %v1383 = vpop.trf.xlu0
    %v1384 = vpop.trf.xlu0
    %v1385 = vpop.trf.xlu0
    %v1386 = vpop.trf.xlu0
    %v1387 = vpop.trf.xlu0
    %v1388 = vpop.trf.xlu0
    %v1389 = vpop.trf.xlu0
    %v1391 = vsel %vm158, %v1382, 0
    %1393 = vmatpush.bf16.msra.mxu0 0
    %1394 = vmatpush.bf16.msra.mxu0 0
    %1395 = vmatpush.bf16.msra.mxu0 0
    %1396 = vmatpush.bf16.msra.mxu0 0
    %1397 = vmatpush.bf16.msra.mxu0 0
    %1398 = vmatpush.bf16.msra.mxu0 0
    %1399 = vmatpush.bf16.msra.mxu0 0
    %1400 = vmatpush.bf16.msra.mxu0 %v322
    %1401 = vmatmul.bf16.gmra.mxu0 %v1391
    %v1402 = vpop.f32.mrf.mxu0
    %v1403 = vadd.f32 0.0, %v1402
    %v1404 = vpop.f32.mrf.mxu0
    %1405 = vdwg.mxu0
    %v1407 = vrot.slane %v1403, 4
    %s1409 = scalar_lea.vmem [#allocation3], 20
    %1410 = vst.msk [vmem:[%s1409] sm:$0xf] %vm340, %v1403
    %1411 = vst.msk [vmem:[%s1409 + $0x20] sm:$0xf] %vm340, %v1407
    %1412 = vrot.lane.b32.xlu0 %v351, 104
    %v1413 = vpop.permute.xlu0 %1412
    %1414 = vrot.lane.b32.xlu0 %v352, 104
    %v1415 = vpop.permute.xlu0 %1414
    %1416 = vrot.lane.b32.xlu0 %v353, 104
    %v1417 = vpop.permute.xlu0 %1416
    %1418 = vrot.lane.b32.xlu0 %v354, 104
    %v1419 = vpop.permute.xlu0 %1418
    %1420 = vrot.lane.b32.xlu0 %v129, 108
    %v1421 = vpop.permute.xlu0 %1420
    %1422 = vrot.lane.b32.xlu0 %v130, 108
    %v1423 = vpop.permute.xlu0 %1422
    %1424 = vrot.lane.b32.xlu0 %v131, 108
    %v1425 = vpop.permute.xlu0 %1424
    %1426 = vrot.lane.b32.xlu0 %v132, 108
    %v1427 = vpop.permute.xlu0 %1426
    %v1430 = vsel %vm141, %v1413, %v1421
    %v1433 = vsel %vm141, %v1415, %v1423
    %v1436 = vsel %vm141, %v1417, %v1425
    %v1439 = vsel %vm141, %v1419, %v1427
    %s1440 = scalar_lea.vmem %s2, 96
    %v1441 = vld [vmem:[%s1440] sm:$0xf]
    %v1442 = vld [vmem:[%s1440 + $0x4] sm:$0xf]
    %v1443 = vld [vmem:[%s1440 + $0x8] sm:$0xf]
    %v1444 = vld [vmem:[%s1440 + $0xc] sm:$0xf]
    %v1445 = vsel %vm158, %v1430, 0
    %v1448 = vsel %vm161, %v1441, 0
    %1450 = vmatpush.bf16.msra.mxu0 0
    %1451 = vmatpush.bf16.msra.mxu0 0
    %1452 = vmatpush.bf16.msra.mxu0 0
    %1453 = vmatpush.bf16.msra.mxu0 0
    %1454 = vmatpush.bf16.msra.mxu0 0
    %1455 = vmatpush.bf16.msra.mxu0 0
    %1456 = vmatpush.bf16.msra.mxu0 0
    %1457 = vmatpush.bf16.msra.mxu0 %v1448
    %1458 = vmatmul.bf16.gmra.mxu0 %v1445
    %v1459 = vpop.f32.mrf.mxu0
    %v1460 = vadd.f32 0.0, %v1459
    %v1461 = vpop.f32.mrf.mxu0
    %1462 = vdwg.mxu0
    %v1463 = vsel %vm158, %v1433, 0
    %v1466 = vsel %vm161, %v1442, 0
    %1468 = vmatpush.bf16.msra.mxu0 0
    %1469 = vmatpush.bf16.msra.mxu0 0
    %1470 = vmatpush.bf16.msra.mxu0 0
    %1471 = vmatpush.bf16.msra.mxu0 0
    %1472 = vmatpush.bf16.msra.mxu0 0
    %1473 = vmatpush.bf16.msra.mxu0 0
    %1474 = vmatpush.bf16.msra.mxu0 0
    %1475 = vmatpush.bf16.msra.mxu0 %v1466
    %1476 = vmatmul.bf16.gmra.mxu0 %v1463
    %v1477 = vpop.f32.mrf.mxu0
    %v1478 = vadd.f32 0.0, %v1477
    %v1479 = vpop.f32.mrf.mxu0
    %1480 = vdwg.mxu0
    %v1481 = vsel %vm158, %v1436, 0
    %v1484 = vsel %vm161, %v1443, 0
    %1486 = vmatpush.bf16.msra.mxu0 0
    %1487 = vmatpush.bf16.msra.mxu0 0
    %1488 = vmatpush.bf16.msra.mxu0 0
    %1489 = vmatpush.bf16.msra.mxu0 0
    %1490 = vmatpush.bf16.msra.mxu0 0
    %1491 = vmatpush.bf16.msra.mxu0 0
    %1492 = vmatpush.bf16.msra.mxu0 0
    %1493 = vmatpush.bf16.msra.mxu0 %v1484
    %1494 = vmatmul.bf16.gmra.mxu0 %v1481
    %v1495 = vpop.f32.mrf.mxu0
    %v1496 = vadd.f32 0.0, %v1495
    %v1497 = vpop.f32.mrf.mxu0
    %1498 = vdwg.mxu0
    %v1499 = vsel %vm158, %v1439, 0
    %v1502 = vsel %vm161, %v1444, 0
    %1504 = vmatpush.bf16.msra.mxu0 0
    %1505 = vmatpush.bf16.msra.mxu0 0
    %1506 = vmatpush.bf16.msra.mxu0 0
    %1507 = vmatpush.bf16.msra.mxu0 0
    %1508 = vmatpush.bf16.msra.mxu0 0
    %1509 = vmatpush.bf16.msra.mxu0 0
    %1510 = vmatpush.bf16.msra.mxu0 0
    %1511 = vmatpush.bf16.msra.mxu0 %v1502
    %1512 = vmatmul.bf16.gmra.mxu0 %v1499
    %v1513 = vpop.f32.mrf.mxu0
    %v1514 = vadd.f32 0.0, %v1513
    %v1515 = vpop.f32.mrf.mxu0
    %1516 = vdwg.mxu0
    %v1517 = vpack.c.bf16 %v1460, %v1460
    %v1518 = vpack.c.bf16 %v1478, %v1478
    %v1519 = vpack.c.bf16 %v1496, %v1496
    %v1520 = vpack.c.bf16 %v1514, %v1514
    %1525 = vrot.lane.b32.xlu0 %v1517, 124
    %v1526 = vpop.permute.xlu0 %1525
    %1527 = vrot.lane.b32.xlu0 %v1518, 124
    %v1528 = vpop.permute.xlu0 %1527
    %1529 = vrot.lane.b32.xlu0 %v1519, 124
    %v1530 = vpop.permute.xlu0 %1529
    %1531 = vrot.lane.b32.xlu0 %v1520, 124
    %v1532 = vpop.permute.xlu0 %1531
    %v1537 = vrot.slane %v1526, 4
    %v1538 = vsel %vm88, %v1537, %v1517
    %v1540 = vunpack.c.l.s4 1983009808
    %v1541 = vunpack.c.0.s8 %v1540
    %v1542 = vperm.slane %v1538, %v1541
    %v1543 = vrot.slane %v1530, 4
    %v1544 = vsel %vm88, %v1543, %v1519
    %v1546 = vunpack.c.l.s4 1983009808
    %v1547 = vunpack.c.0.s8 %v1546
    %v1548 = vperm.slane %v1544, %v1547
    %v1549 = vrot.slane %v1548, 4
    %v1550 = vsel %vm88, %v1549, %v1542
    %v1552 = vunpack.c.l.s4 1934713408
    %v1553 = vunpack.c.0.s8 %v1552
    %v1554 = vperm.slane %v1550, %v1553
    %v1555 = vrot.slane %v1528, 4
    %v1556 = vsel %vm88, %v1555, %v1518
    %v1558 = vunpack.c.l.s4 1983009808
    %v1559 = vunpack.c.0.s8 %v1558
    %v1560 = vperm.slane %v1556, %v1559
    %v1561 = vrot.slane %v1532, 4
    %v1562 = vsel %vm88, %v1561, %v1520
    %v1564 = vunpack.c.l.s4 1983009808
    %v1565 = vunpack.c.0.s8 %v1564
    %v1566 = vperm.slane %v1562, %v1565
    %v1567 = vrot.slane %v1566, 4
    %v1568 = vsel %vm88, %v1567, %v1560
    %v1570 = vunpack.c.l.s4 1934713408
    %v1571 = vunpack.c.0.s8 %v1570
    %v1572 = vperm.slane %v1568, %v1571
    %v1575 = vpack.i.b16 %v1572, %v1554
    %v1576 = vshrl.u32 %v1554, 16
    %v1577 = vshrl.u32 %v1572, 16
    %v1578 = vpack.i.b16 %v1577, %v1576
    %v1579 = vunpack.c.l.b16 %v1578
    %v1580 = vpack.c.b16 %v1579, %v1579
    %1581 = vrot.lane.b32.xlu0 %v1580, 4
    %v1582 = vpop.permute.xlu0 %1581
    %v1585 = vsel %vm141, %v1575, %v1582
    %1587 = vxpose.xlu0.c.b16.start [1/8] %v1585, 128
    %1588 = vxpose.xlu0.c.b16.cont [2/8] 0, 128
    %1589 = vxpose.xlu0.c.b16.cont [3/8] 0, 128
    %1590 = vxpose.xlu0.c.b16.cont [4/8] 0, 128
    %1591 = vxpose.xlu0.c.b16.cont [5/8] 0, 128
    %1592 = vxpose.xlu0.c.b16.cont [6/8] 0, 128
    %1593 = vxpose.xlu0.c.b16.cont [7/8] 0, 128
    %1594 = vxpose.xlu0.c.b16.end [8/8] 0, 128
    %v1595 = vpop.trf.xlu0
    %v1596 = vpop.trf.xlu0
    %v1597 = vpop.trf.xlu0
    %v1598 = vpop.trf.xlu0
    %v1599 = vpop.trf.xlu0
    %v1600 = vpop.trf.xlu0
    %v1601 = vpop.trf.xlu0
    %v1602 = vpop.trf.xlu0
    %v1604 = vsel %vm158, %v1595, 0
    %1606 = vmatpush.bf16.msra.mxu0 0
    %1607 = vmatpush.bf16.msra.mxu0 0
    %1608 = vmatpush.bf16.msra.mxu0 0
    %1609 = vmatpush.bf16.msra.mxu0 0
    %1610 = vmatpush.bf16.msra.mxu0 0
    %1611 = vmatpush.bf16.msra.mxu0 0
    %1612 = vmatpush.bf16.msra.mxu0 0
    %1613 = vmatpush.bf16.msra.mxu0 %v322
    %1614 = vmatmul.bf16.gmra.mxu0 %v1604
    %v1615 = vpop.f32.mrf.mxu0
    %v1616 = vadd.f32 0.0, %v1615
    %v1617 = vpop.f32.mrf.mxu0
    %1618 = vdwg.mxu0
    %v1620 = vrot.slane %v1616, 4
    %s1622 = scalar_lea.vmem [#allocation3], 24
    %1623 = vst.msk [vmem:[%s1622] sm:$0xf] %vm340, %v1616
    %1624 = vst.msk [vmem:[%s1622 + $0x20] sm:$0xf] %vm340, %v1620
    %1625 = vrot.lane.b32.xlu0 %v351, 100
    %v1626 = vpop.permute.xlu0 %1625
    %1627 = vrot.lane.b32.xlu0 %v352, 100
    %v1628 = vpop.permute.xlu0 %1627
    %1629 = vrot.lane.b32.xlu0 %v353, 100
    %v1630 = vpop.permute.xlu0 %1629
    %1631 = vrot.lane.b32.xlu0 %v354, 100
    %v1632 = vpop.permute.xlu0 %1631
    %1633 = vrot.lane.b32.xlu0 %v129, 104
    %v1634 = vpop.permute.xlu0 %1633
    %1635 = vrot.lane.b32.xlu0 %v130, 104
    %v1636 = vpop.permute.xlu0 %1635
    %1637 = vrot.lane.b32.xlu0 %v131, 104
    %v1638 = vpop.permute.xlu0 %1637
    %1639 = vrot.lane.b32.xlu0 %v132, 104
    %v1640 = vpop.permute.xlu0 %1639
    %v1643 = vsel %vm141, %v1626, %v1634
    %v1646 = vsel %vm141, %v1628, %v1636
    %v1649 = vsel %vm141, %v1630, %v1638
    %v1652 = vsel %vm141, %v1632, %v1640
    %s1653 = scalar_lea.vmem %s2, 112
    %v1654 = vld [vmem:[%s1653] sm:$0xf]
    %v1655 = vld [vmem:[%s1653 + $0x4] sm:$0xf]
    %v1656 = vld [vmem:[%s1653 + $0x8] sm:$0xf]
    %v1657 = vld [vmem:[%s1653 + $0xc] sm:$0xf]
    %v1658 = vsel %vm158, %v1643, 0
    %v1661 = vsel %vm161, %v1654, 0
    %1663 = vmatpush.bf16.msra.mxu0 0
    %1664 = vmatpush.bf16.msra.mxu0 0
    %1665 = vmatpush.bf16.msra.mxu0 0
    %1666 = vmatpush.bf16.msra.mxu0 0
    %1667 = vmatpush.bf16.msra.mxu0 0
    %1668 = vmatpush.bf16.msra.mxu0 0
    %1669 = vmatpush.bf16.msra.mxu0 0
    %1670 = vmatpush.bf16.msra.mxu0 %v1661
    %1671 = vmatmul.bf16.gmra.mxu0 %v1658
    %v1672 = vpop.f32.mrf.mxu0
    %v1673 = vadd.f32 0.0, %v1672
    %v1674 = vpop.f32.mrf.mxu0
    %1675 = vdwg.mxu0
    %v1676 = vsel %vm158, %v1646, 0
    %v1679 = vsel %vm161, %v1655, 0
    %1681 = vmatpush.bf16.msra.mxu0 0
    %1682 = vmatpush.bf16.msra.mxu0 0
    %1683 = vmatpush.bf16.msra.mxu0 0
    %1684 = vmatpush.bf16.msra.mxu0 0
    %1685 = vmatpush.bf16.msra.mxu0 0
    %1686 = vmatpush.bf16.msra.mxu0 0
    %1687 = vmatpush.bf16.msra.mxu0 0
    %1688 = vmatpush.bf16.msra.mxu0 %v1679
    %1689 = vmatmul.bf16.gmra.mxu0 %v1676
    %v1690 = vpop.f32.mrf.mxu0
    %v1691 = vadd.f32 0.0, %v1690
    %v1692 = vpop.f32.mrf.mxu0
    %1693 = vdwg.mxu0
    %v1694 = vsel %vm158, %v1649, 0
    %v1697 = vsel %vm161, %v1656, 0
    %1699 = vmatpush.bf16.msra.mxu0 0
    %1700 = vmatpush.bf16.msra.mxu0 0
    %1701 = vmatpush.bf16.msra.mxu0 0
    %1702 = vmatpush.bf16.msra.mxu0 0
    %1703 = vmatpush.bf16.msra.mxu0 0
    %1704 = vmatpush.bf16.msra.mxu0 0
    %1705 = vmatpush.bf16.msra.mxu0 0
    %1706 = vmatpush.bf16.msra.mxu0 %v1697
    %1707 = vmatmul.bf16.gmra.mxu0 %v1694
    %v1708 = vpop.f32.mrf.mxu0
    %v1709 = vadd.f32 0.0, %v1708
    %v1710 = vpop.f32.mrf.mxu0
    %1711 = vdwg.mxu0
    %v1712 = vsel %vm158, %v1652, 0
    %v1715 = vsel %vm161, %v1657, 0
    %1717 = vmatpush.bf16.msra.mxu0 0
    %1718 = vmatpush.bf16.msra.mxu0 0
    %1719 = vmatpush.bf16.msra.mxu0 0
    %1720 = vmatpush.bf16.msra.mxu0 0
    %1721 = vmatpush.bf16.msra.mxu0 0
    %1722 = vmatpush.bf16.msra.mxu0 0
    %1723 = vmatpush.bf16.msra.mxu0 0
    %1724 = vmatpush.bf16.msra.mxu0 %v1715
    %1725 = vmatmul.bf16.gmra.mxu0 %v1712
    %v1726 = vpop.f32.mrf.mxu0
    %v1727 = vadd.f32 0.0, %v1726
    %v1728 = vpop.f32.mrf.mxu0
    %1729 = vdwg.mxu0
    %v1730 = vpack.c.bf16 %v1673, %v1673
    %v1731 = vpack.c.bf16 %v1691, %v1691
    %v1732 = vpack.c.bf16 %v1709, %v1709
    %v1733 = vpack.c.bf16 %v1727, %v1727
    %1738 = vrot.lane.b32.xlu0 %v1730, 124
    %v1739 = vpop.permute.xlu0 %1738
    %1740 = vrot.lane.b32.xlu0 %v1731, 124
    %v1741 = vpop.permute.xlu0 %1740
    %1742 = vrot.lane.b32.xlu0 %v1732, 124
    %v1743 = vpop.permute.xlu0 %1742
    %1744 = vrot.lane.b32.xlu0 %v1733, 124
    %v1745 = vpop.permute.xlu0 %1744
    %v1750 = vrot.slane %v1739, 4
    %v1751 = vsel %vm88, %v1750, %v1730
    %v1753 = vunpack.c.l.s4 1983009808
    %v1754 = vunpack.c.0.s8 %v1753
    %v1755 = vperm.slane %v1751, %v1754
    %v1756 = vrot.slane %v1743, 4
    %v1757 = vsel %vm88, %v1756, %v1732
    %v1759 = vunpack.c.l.s4 1983009808
    %v1760 = vunpack.c.0.s8 %v1759
    %v1761 = vperm.slane %v1757, %v1760
    %v1762 = vrot.slane %v1761, 4
    %v1763 = vsel %vm88, %v1762, %v1755
    %v1765 = vunpack.c.l.s4 1934713408
    %v1766 = vunpack.c.0.s8 %v1765
    %v1767 = vperm.slane %v1763, %v1766
    %v1768 = vrot.slane %v1741, 4
    %v1769 = vsel %vm88, %v1768, %v1731
    %v1771 = vunpack.c.l.s4 1983009808
    %v1772 = vunpack.c.0.s8 %v1771
    %v1773 = vperm.slane %v1769, %v1772
    %v1774 = vrot.slane %v1745, 4
    %v1775 = vsel %vm88, %v1774, %v1733
    %v1777 = vunpack.c.l.s4 1983009808
    %v1778 = vunpack.c.0.s8 %v1777
    %v1779 = vperm.slane %v1775, %v1778
    %v1780 = vrot.slane %v1779, 4
    %v1781 = vsel %vm88, %v1780, %v1773
    %v1783 = vunpack.c.l.s4 1934713408
    %v1784 = vunpack.c.0.s8 %v1783
    %v1785 = vperm.slane %v1781, %v1784
    %v1788 = vpack.i.b16 %v1785, %v1767
    %v1789 = vshrl.u32 %v1767, 16
    %v1790 = vshrl.u32 %v1785, 16
    %v1791 = vpack.i.b16 %v1790, %v1789
    %v1792 = vunpack.c.l.b16 %v1791
    %v1793 = vpack.c.b16 %v1792, %v1792
    %1794 = vrot.lane.b32.xlu0 %v1793, 4
    %v1795 = vpop.permute.xlu0 %1794
    %v1798 = vsel %vm141, %v1788, %v1795
    %1800 = vxpose.xlu0.c.b16.start [1/8] %v1798, 128
    %1801 = vxpose.xlu0.c.b16.cont [2/8] 0, 128
    %1802 = vxpose.xlu0.c.b16.cont [3/8] 0, 128
    %1803 = vxpose.xlu0.c.b16.cont [4/8] 0, 128
    %1804 = vxpose.xlu0.c.b16.cont [5/8] 0, 128
    %1805 = vxpose.xlu0.c.b16.cont [6/8] 0, 128
    %1806 = vxpose.xlu0.c.b16.cont [7/8] 0, 128
    %1807 = vxpose.xlu0.c.b16.end [8/8] 0, 128
    %v1808 = vpop.trf.xlu0
    %v1809 = vpop.trf.xlu0
    %v1810 = vpop.trf.xlu0
    %v1811 = vpop.trf.xlu0
    %v1812 = vpop.trf.xlu0
    %v1813 = vpop.trf.xlu0
    %v1814 = vpop.trf.xlu0
    %v1815 = vpop.trf.xlu0
    %v1817 = vsel %vm158, %v1808, 0
    %1819 = vmatpush.bf16.msra.mxu0 0
    %1820 = vmatpush.bf16.msra.mxu0 0
    %1821 = vmatpush.bf16.msra.mxu0 0
    %1822 = vmatpush.bf16.msra.mxu0 0
    %1823 = vmatpush.bf16.msra.mxu0 0
    %1824 = vmatpush.bf16.msra.mxu0 0
    %1825 = vmatpush.bf16.msra.mxu0 0
    %1826 = vmatpush.bf16.msra.mxu0 %v322
    %1827 = vmatmul.bf16.gmra.mxu0 %v1817
    %v1828 = vpop.f32.mrf.mxu0
    %v1829 = vadd.f32 0.0, %v1828
    %v1830 = vpop.f32.mrf.mxu0
    %1831 = vdwg.mxu0
    %v1833 = vrot.slane %v1829, 4
    %s1835 = scalar_lea.vmem [#allocation3], 28
    %1836 = vst.msk [vmem:[%s1835] sm:$0xf] %vm340, %v1829
    %1837 = vst.msk [vmem:[%s1835 + $0x20] sm:$0xf] %vm340, %v1833
    // Predicated region
    $region18: #{tpu_custom_call.1} parent=1 // pred_check
      _
    $region19: #{tpu_custom_call.1} parent=1 // pred_check_branch
      %1839 = sbr.rel (0) target = $region21
    $region20: #{tpu_custom_call.1} parent=1 // pred_region
      %1841 = vsyncadd [#allocation4], 0
      %s1842 = sshll.u32 [#allocation3], 4
      %s1843 = int_to_ptr.vmem [resolvable:$true] %s1842
      %s1844 = sshll.u32 %s4, 4
      %s1845 = int_to_ptr.hbm [resolvable:$true] %s1844
      %1850 = dma.vmem_to_hbm [thread:$0]  %s1843, 1024, %s1845, [#allocation4], 64, 64, 4
    $region21: #{tpu_custom_call.1} parent=1 // pred_fallthru
      _
    // Predicated region
    $region22: #{tpu_custom_call.1} parent=1 // pred_check
      _
    $region23: #{tpu_custom_call.1} parent=1 // pred_check_branch
      %1852 = sbr.rel (0) target = $region25
    $region24: #{tpu_custom_call.1} parent=1 // pred_region
      %1854 = dma.done [#allocation4], 1024
    $region25: #{tpu_custom_call.1} parent=1 // pred_fallthru
      _
    %1855 = vsyncpa [#allocation4], 1

</llo_original>
